<compile_context>
chip_gen: v6e
topology: v6e:2x2x1
jax: 0.10.0
libtpu: 0.0.40
codegen_flags: <defaults>
</compile_context>

<pallas_src>
import functools

import jax
import jax.numpy as jnp
import numpy as np
from jax.experimental import pallas as pl
from jax.experimental.pallas import tpu as pltpu

LOSS_WEIGHT = (20.0, 1e-4, 1e-4)
_GRAD_EPS = 1e-6


def _sublane_multiple(itemsize):
    # f32 -> 8, bf16 -> 16, int8/fp8 -> 32 sublanes per native tile.
    return max(8, 32 // max(1, itemsize))


def _pick_tile_h(H, C, W, itemsize, target_f32_block_bytes=2 << 20):
    """Largest H-tile that satisfies the sublane constraint and keeps one
    (1, C, TH, W) block under `target_f32_block_bytes` in f32 units (the
    kernel casts to f32 internally, so size the budget off that)."""
    sub = _sublane_multiple(itemsize)
    if H % sub != 0:
        return H  # whole-H block (block dim == full array dim is always legal)
    row_f32_bytes = C * W * 4
    best = sub
    for th in range(sub, H + 1, sub):
        if H % th == 0 and th * row_f32_bytes <= target_f32_block_bytes:
            best = th
    return best


def _make_kernel(C, H, W, TH):
    HT = H // TH
    inv_chw = 1.0 / float(C * H * W)

    def kernel(x_ref, y_ref, mse_ref, grad_ref,
               mse_acc, grad_acc, cx_ref, cy_ref):
        k = pl.program_id(1)

        @pl.when(k == 0)
        def _init():
            mse_acc[...] = jnp.zeros_like(mse_acc)
            grad_acc[...] = jnp.zeros_like(grad_acc)
            cx_ref[...] = jnp.zeros_like(cx_ref)
            cy_ref[...] = jnp.zeros_like(cy_ref)

        x = x_ref[0].astype(jnp.float32)   # (C, TH, W)
        y = y_ref[0].astype(jnp.float32)

        # ---- per-batch MSE partial sum over this H-tile ----
        d = x - y
        mse_acc[...] += jnp.sum(d * d)

        # ---- gradient-prior partial sum (first 3 channels) ----
        x3 = x[:3]                         # (3, TH, W)
        y3 = y[:3]
        cx = cx_ref[...]                   # image rows h0-2, h0-1 (zeros at k==0)
        cy = cy_ref[...]

        # boundary masks: 2-D, built once per step, shared by X and Y maps.
        iw = jax.lax.broadcasted_iota(jnp.int32, (TH, W), 1)
        ih = jax.lax.broadcasted_iota(jnp.int32, (TH, W), 0)
        not_last_col = iw < (W - 1)
        not_first_col = iw > 0
        row0 = ih == 0

        def delayed_rows(t, c):
            # gradient output row j of this step is image row (h0 - 1 + j):
            #   center[j] = image row h0-1+j,  above[j] = image row h0-2+j,
            #   below[j]  = image row h0+j (= the tile itself).
            center = jnp.where(row0, c[:, 1:2, :], pltpu.roll(t, shift=1, axis=1))
            above = jnp.where(row0, c[:, 0:1, :], pltpu.roll(center, shift=1, axis=1))
            return center, above

        def w_grad_sq(center):
            # ((r - l) * 0.5)^2 with zero borders (PyTorch F.pad) along W.
            r = jnp.where(not_last_col, pltpu.roll(center, shift=W - 1, axis=2), 0.0)
            l = jnp.where(not_first_col, pltpu.roll(center, shift=1, axis=2), 0.0)
            return ((r - l) * 0.5) ** 2

        xc, xa = delayed_rows(x3, cx)
        yc, ya = delayed_rows(y3, cy)
        gx = jnp.sqrt(w_grad_sq(xc) + ((xa - x3) * 0.5) ** 2 + _GRAD_EPS)
        gy = jnp.sqrt(w_grad_sq(yc) + ((ya - y3) * 0.5) ** 2 + _GRAD_EPS)
        dg = jnp.abs(gx - gy)
        # At k == 0 the first delayed row is a zero-pad artifact (image row -1):
        # mask it before the single reduction.
        dg = jnp.where(jnp.logical_and(k == 0, row0), 0.0, dg)
        grad_acc[...] += jnp.sum(dg)

        # carry this tile's last two rows to the next H-tile
        cx_ref[...] = x3[:, TH - 2:TH, :]
        cy_ref[...] = y3[:, TH - 2:TH, :]

        @pl.when(k == HT - 1)
        def _finalize():
            # The delayed scheme has not emitted image row H-1 yet:
            # its "below" is the zero padding, its "above" is row H-2.
            iw1 = jax.lax.broadcasted_iota(jnp.int32, (1, W), 1)
            nl1 = iw1 < (W - 1)
            nf1 = iw1 > 0

            def last_row_grad(t):
                c = t[:, TH - 1:TH, :]
                a = t[:, TH - 2:TH - 1, :]
                r = jnp.where(nl1, pltpu.roll(c, shift=W - 1, axis=2), 0.0)
                l = jnp.where(nf1, pltpu.roll(c, shift=1, axis=2), 0.0)
                return jnp.sqrt(((r - l) * 0.5) ** 2 + (a * 0.5) ** 2 + _GRAD_EPS)

            g_last = jnp.sum(jnp.abs(last_row_grad(x3) - last_row_grad(y3)))
            mse_ref[...] = jnp.broadcast_to(
                (mse_acc[...] * inv_chw)[:, None, :], (1, 8, 128))
            grad_ref[...] = jnp.broadcast_to(
                (grad_acc[...] + g_last)[:, None, :], (1, 8, 128))

    return kernel


@functools.partial(jax.jit, static_argnames=("tile_h",))
def image_loss(out_images, target_images, tile_h=None):
    """loss, metrics = ImageLoss(gradient=True, loss_type='mse')(X, Y)."""
    B, C, H, W = out_images.shape
    assert out_images.shape == target_images.shape
    assert C >= 3, "ImageLoss gradient branch uses the first 3 channels"
    assert H >= 2

    itemsize = jnp.dtype(out_images.dtype).itemsize
    sub = _sublane_multiple(itemsize)
    TH = tile_h if tile_h is not None else _pick_tile_h(H, C, W, itemsize)
    assert H % TH == 0 and (TH % sub == 0 or TH == H) and TH >= 2
    HT = H // TH

    # Budget: 2 inputs x 2 pipeline buffers x native block + f32 temporaries.
    block_bytes = C * TH * W * itemsize
    block_f32 = C * TH * W * 4
    vmem_limit = int(min(40 << 20, max(32 << 20, 4 * block_bytes + 8 * block_f32 + (4 << 20))))

    kernel = _make_kernel(C, H, W, TH)
    mse_pb, grad_pb = pl.pallas_call(
        kernel,
        out_shape=(
            jax.ShapeDtypeStruct((B, 8, 128), jnp.float32),
            jax.ShapeDtypeStruct((B, 8, 128), jnp.float32),
        ),
        grid_spec=pltpu.PrefetchScalarGridSpec(
            num_scalar_prefetch=0,
            grid=(B, HT),
            in_specs=[
                pl.BlockSpec((1, C, TH, W), lambda b, k: (b, 0, k, 0)),
                pl.BlockSpec((1, C, TH, W), lambda b, k: (b, 0, k, 0)),
            ],
            out_specs=(
                pl.BlockSpec((1, 8, 128), lambda b, k: (b, 0, 0)),
                pl.BlockSpec((1, 8, 128), lambda b, k: (b, 0, 0)),
            ),
            scratch_shapes=[
                pltpu.VMEM((1, 128), jnp.float32),   # per-batch MSE accumulator
                pltpu.VMEM((1, 128), jnp.float32),   # per-batch grad-L1 accumulator
                pltpu.VMEM((3, 2, W), jnp.float32),  # carried rows of X[:3]
                pltpu.VMEM((3, 2, W), jnp.float32),  # carried rows of Y[:3]
            ],
        ),
        compiler_params=pltpu.CompilerParams(
            dimension_semantics=("parallel", "arbitrary"),
            vmem_limit_bytes=vmem_limit,
        ),
    )(out_images, target_images)

    main_loss = mse_pb[:, 0, 0]                                      # (B,)
    gp = jnp.sum(grad_pb[:, 0, 0]) / jnp.float32(B * 3 * H * W)      # scalar
    loss = LOSS_WEIGHT[0] * main_loss + LOSS_WEIGHT[1] * gp          # (B,)
    metrics = {"main_loss": jnp.mean(main_loss), "gradient loss": gp}
    return loss, metrics


# ---------------- pure-JAX reference (mirrors the PyTorch code) ----------------
def _ref_gradient_map(x):
    H, W = x.shape[-2], x.shape[-1]
    r = jnp.pad(x, ((0, 0), (0, 0), (0, 0), (0, 1)))[:, :, :, 1:]
    l = jnp.pad(x, ((0, 0), (0, 0), (0, 0), (1, 0)))[:, :, :, :W]
    t = jnp.pad(x, ((0, 0), (0, 0), (1, 0), (0, 0)))[:, :, :H, :]
    b = jnp.pad(x, ((0, 0), (0, 0), (0, 1), (0, 0)))[:, :, 1:, :]
    return jnp.sqrt(((r - l) * 0.5) ** 2 + ((t - b) * 0.5) ** 2 + _GRAD_EPS)


def _ref_image_loss(x, y):
    x = x.astype(jnp.float32)
    y = y.astype(jnp.float32)
    main = jnp.mean((x - y) ** 2, axis=(1, 2, 3))
    gp = jnp.mean(jnp.abs(_ref_gradient_map(x[:, :3]) - _ref_gradient_map(y[:, :3])))
    loss = LOSS_WEIGHT[0] * main + LOSS_WEIGHT[1] * gp
    return loss, {"main_loss": jnp.mean(main), "gradient loss": gp}


if __name__ == "__main__":
    key = jax.random.PRNGKey(0)
    k1, k2, k3, k4 = jax.random.split(key, 4)

    def _check(x, y, tile_h=None):
        loss, metrics = image_loss(x, y, tile_h=tile_h)
        jax.block_until_ready(loss)
        ref_loss, ref_metrics = _ref_image_loss(x, y)
        np.testing.assert_allclose(np.asarray(loss), np.asarray(ref_loss),
                                   rtol=1e-4, atol=1e-5)
        np.testing.assert_allclose(float(metrics["main_loss"]),
                                   float(ref_metrics["main_loss"]),
                                   rtol=1e-4, atol=1e-6)
        np.testing.assert_allclose(float(metrics["gradient loss"]),
                                   float(ref_metrics["gradient loss"]),
                                   rtol=1e-4, atol=1e-6)

    # 1) single H-tile path, f32 inputs (default module-scale shapes)
    x1 = jax.random.normal(k1, (2, 4, 16, 16), jnp.float32)
    y1 = jax.random.normal(k2, (2, 4, 16, 16), jnp.float32)
    _check(x1, y1)

    # 2) multi H-tile path (exercises the carried-row halo), bf16 streaming
    x2 = jax.random.normal(k3, (2, 4, 32, 16), jnp.float32).astype(jnp.bfloat16)
    y2 = jax.random.normal(k4, (2, 4, 32, 16), jnp.float32).astype(jnp.bfloat16)
    _check(x2, y2, tile_h=16)

    print("KERNEL_OK")
</pallas_src>

<mosaic_0001>
module attributes {stable_mosaic.version = 11 : i64} {
  func.func @kernel(%arg0: i32, %arg1: i32, %arg2: memref<1x4x16x16xf32, #tpu.memory_space<vmem>>, %arg3: memref<1x4x16x16xf32, #tpu.memory_space<vmem>>, %arg4: memref<1x8x128xf32, #tpu.memory_space<vmem>>, %arg5: memref<1x8x128xf32, #tpu.memory_space<vmem>>, %arg6: memref<1x128xf32, #tpu.memory_space<vmem>>, %arg7: memref<1x128xf32, #tpu.memory_space<vmem>>, %arg8: memref<3x2x16xf32, #tpu.memory_space<vmem>>, %arg9: memref<3x2x16xf32, #tpu.memory_space<vmem>>) attributes {dimension_semantics = [#tpu.dimension_semantics<parallel>, #tpu.dimension_semantics<arbitrary>], iteration_bounds = array<i64: 2, 1>, scalar_prefetch = 0 : i64, scratch_operands = 4 : i64, tpu.core_type = #tpu.core_type<tc>, window_params = [{transform_indices = @transform_0, window_bounds = array<i64: 1, 4, 16, 16>}, {transform_indices = @transform_1, window_bounds = array<i64: 1, 4, 16, 16>}, {transform_indices = @transform_2, window_bounds = array<i64: 1, 8, 128>}, {transform_indices = @transform_3, window_bounds = array<i64: 1, 8, 128>}]} {
    %c0_i32 = arith.constant 0 : i32
    %0 = arith.cmpi eq, %arg1, %c0_i32 : i32
    %1 = arith.extui %0 : i1 to i32
    %c0_i32_0 = arith.constant 0 : i32
    %2 = arith.cmpi ne, %1, %c0_i32_0 : i32
    scf.if %2 {
      %cst_52 = arith.constant 0.000000e+00 : f32
      %125 = vector.broadcast %cst_52 : f32 to vector<1x128xf32>
      %c0_53 = arith.constant 0 : index
      %c0_54 = arith.constant 0 : index
      %126 = vector.load %arg6[%c0_53, %c0_54] : memref<1x128xf32, #tpu.memory_space<vmem>>, vector<1x128xf32>
      tpu.vector_store %arg6[%c0_53, %c0_54], %125 {strides = array<i32>} : memref<1x128xf32, #tpu.memory_space<vmem>>, vector<1x128xf32>,
      %cst_55 = arith.constant 0.000000e+00 : f32
      %127 = vector.broadcast %cst_55 : f32 to vector<1x128xf32>
      %c0_56 = arith.constant 0 : index
      %c0_57 = arith.constant 0 : index
      %128 = vector.load %arg7[%c0_56, %c0_57] : memref<1x128xf32, #tpu.memory_space<vmem>>, vector<1x128xf32>
      tpu.vector_store %arg7[%c0_56, %c0_57], %127 {strides = array<i32>} : memref<1x128xf32, #tpu.memory_space<vmem>>, vector<1x128xf32>,
      %cst_58 = arith.constant 0.000000e+00 : f32
      %129 = vector.broadcast %cst_58 : f32 to vector<3x2x16xf32>
      %c0_59 = arith.constant 0 : index
      %c0_60 = arith.constant 0 : index
      %c0_61 = arith.constant 0 : index
      %130 = vector.load %arg8[%c0_59, %c0_60, %c0_61] : memref<3x2x16xf32, #tpu.memory_space<vmem>>, vector<3x2x16xf32>
      tpu.vector_store %arg8[%c0_59, %c0_60, %c0_61], %129 {strides = array<i32>} : memref<3x2x16xf32, #tpu.memory_space<vmem>>, vector<3x2x16xf32>,
      %cst_62 = arith.constant 0.000000e+00 : f32
      %131 = vector.broadcast %cst_62 : f32 to vector<3x2x16xf32>
      %c0_63 = arith.constant 0 : index
      %c0_64 = arith.constant 0 : index
      %c0_65 = arith.constant 0 : index
      %132 = vector.load %arg9[%c0_63, %c0_64, %c0_65] : memref<3x2x16xf32, #tpu.memory_space<vmem>>, vector<3x2x16xf32>
      tpu.vector_store %arg9[%c0_63, %c0_64, %c0_65], %131 {strides = array<i32>} : memref<3x2x16xf32, #tpu.memory_space<vmem>>, vector<3x2x16xf32>,
    } else {
    }
    %c0 = arith.constant 0 : index
    %c0_1 = arith.constant 0 : index
    %c0_2 = arith.constant 0 : index
    %c0_3 = arith.constant 0 : index
    %3 = vector.load %arg2[%c0, %c0_1, %c0_2, %c0_3] : memref<1x4x16x16xf32, #tpu.memory_space<vmem>>, vector<1x4x16x16xf32>
    %4 = vector.shape_cast %3 : vector<1x4x16x16xf32> to vector<4x16x16xf32>
    %c0_4 = arith.constant 0 : index
    %c0_5 = arith.constant 0 : index
    %c0_6 = arith.constant 0 : index
    %c0_7 = arith.constant 0 : index
    %5 = vector.load %arg3[%c0_4, %c0_5, %c0_6, %c0_7] : memref<1x4x16x16xf32, #tpu.memory_space<vmem>>, vector<1x4x16x16xf32>
    %6 = vector.shape_cast %5 : vector<1x4x16x16xf32> to vector<4x16x16xf32>
    %7 = arith.subf %4, %6 : vector<4x16x16xf32>
    %c0_8 = arith.constant 0 : index
    %c0_9 = arith.constant 0 : index
    %8 = vector.load %arg6[%c0_8, %c0_9] : memref<1x128xf32, #tpu.memory_space<vmem>>, vector<1x128xf32>
    %9 = arith.mulf %7, %7 : vector<4x16x16xf32>
    %10 = vector.shape_cast %9 : vector<4x16x16xf32> to vector<1x4x16x16xf32>
    %cst = arith.constant dense<0.000000e+00> : vector<1xf32>
    %11 = vector.multi_reduction <add>, %10, %cst [1, 2, 3] : vector<1x4x16x16xf32> to vector<1xf32>
    %12 = vector.shape_cast %11 : vector<1xf32> to vector<1x1x1x1xf32>
    %13 = vector.extract %12[0, 0, 0, 0] : f32 from vector<1x1x1x1xf32>
    %14 = vector.broadcast %13 : f32 to vector<1x128xf32>
    %15 = arith.addf %8, %14 : vector<1x128xf32>
    %c0_10 = arith.constant 0 : index
    %c0_11 = arith.constant 0 : index
    %16 = vector.load %arg6[%c0_10, %c0_11] : memref<1x128xf32, #tpu.memory_space<vmem>>, vector<1x128xf32>
    tpu.vector_store %arg6[%c0_10, %c0_11], %15 {strides = array<i32>} : memref<1x128xf32, #tpu.memory_space<vmem>>, vector<1x128xf32>,
    %17 = vector.extract_strided_slice %4 {offsets = [0, 0, 0], sizes = [3, 16, 16], strides = [1, 1, 1]} : vector<4x16x16xf32> to vector<3x16x16xf32>
    %18 = vector.extract_strided_slice %6 {offsets = [0, 0, 0], sizes = [3, 16, 16], strides = [1, 1, 1]} : vector<4x16x16xf32> to vector<3x16x16xf32>
    %c0_12 = arith.constant 0 : index
    %c0_13 = arith.constant 0 : index
    %c0_14 = arith.constant 0 : index
    %19 = vector.load %arg8[%c0_12, %c0_13, %c0_14] : memref<3x2x16xf32, #tpu.memory_space<vmem>>, vector<3x2x16xf32>
    %c0_15 = arith.constant 0 : index
    %c0_16 = arith.constant 0 : index
    %c0_17 = arith.constant 0 : index
    %20 = vector.load %arg9[%c0_15, %c0_16, %c0_17] : memref<3x2x16xf32, #tpu.memory_space<vmem>>, vector<3x2x16xf32>
    %21 = tpu.iota {dimensions = array<i32: 1>} : vector<16x16xi32>
    %22 = tpu.iota {dimensions = array<i32: 0>} : vector<16x16xi32>
    %c15_i32 = arith.constant 15 : i32
    %23 = vector.broadcast %c15_i32 : i32 to vector<16x16xi32>
    %24 = arith.cmpi slt, %21, %23 : vector<16x16xi32>
    %c0_i32_18 = arith.constant 0 : i32
    %25 = vector.broadcast %c0_i32_18 : i32 to vector<16x16xi32>
    %26 = arith.cmpi sgt, %21, %25 : vector<16x16xi32>
    %c0_i32_19 = arith.constant 0 : i32
    %27 = vector.broadcast %c0_i32_19 : i32 to vector<16x16xi32>
    %28 = arith.cmpi eq, %22, %27 : vector<16x16xi32>
    %29 = vector.extract_strided_slice %19 {offsets = [0, 1, 0], sizes = [3, 1, 16], strides = [1, 1, 1]} : vector<3x2x16xf32> to vector<3x1x16xf32>
    %c1_i32 = arith.constant 1 : i32
    %30 = tpu.dynamic_rotate %17 by %c1_i32 dim 1 : vector<3x16x16xf32>, i32 -> vector<3x16x16xf32>
    %31 = vector.shape_cast %28 : vector<16x16xi1> to vector<1x16x16xi1>
    %32 = vector.broadcast %31 : vector<1x16x16xi1> to vector<3x16x16xi1>
    %33 = vector.shape_cast %29 : vector<3x1x16xf32> to vector<3x1x16xf32>
    %34 = vector.broadcast %33 : vector<3x1x16xf32> to vector<3x16x16xf32>
    %35 = arith.select %32, %34, %30 : vector<3x16x16xi1>, vector<3x16x16xf32>
    %36 = vector.extract_strided_slice %19 {offsets = [0, 0, 0], sizes = [3, 1, 16], strides = [1, 1, 1]} : vector<3x2x16xf32> to vector<3x1x16xf32>
    %c1_i32_20 = arith.constant 1 : i32
    %37 = tpu.dynamic_rotate %35 by %c1_i32_20 dim 1 : vector<3x16x16xf32>, i32 -> vector<3x16x16xf32>
    %38 = vector.shape_cast %28 : vector<16x16xi1> to vector<1x16x16xi1>
    %39 = vector.broadcast %38 : vector<1x16x16xi1> to vector<3x16x16xi1>
    %40 = vector.shape_cast %36 : vector<3x1x16xf32> to vector<3x1x16xf32>
    %41 = vector.broadcast %40 : vector<3x1x16xf32> to vector<3x16x16xf32>
    %42 = arith.select %39, %41, %37 : vector<3x16x16xi1>, vector<3x16x16xf32>
    %43 = vector.extract_strided_slice %20 {offsets = [0, 1, 0], sizes = [3, 1, 16], strides = [1, 1, 1]} : vector<3x2x16xf32> to vector<3x1x16xf32>
    %c1_i32_21 = arith.constant 1 : i32
    %44 = tpu.dynamic_rotate %18 by %c1_i32_21 dim 1 : vector<3x16x16xf32>, i32 -> vector<3x16x16xf32>
    %45 = vector.shape_cast %28 : vector<16x16xi1> to vector<1x16x16xi1>
    %46 = vector.broadcast %45 : vector<1x16x16xi1> to vector<3x16x16xi1>
    %47 = vector.shape_cast %43 : vector<3x1x16xf32> to vector<3x1x16xf32>
    %48 = vector.broadcast %47 : vector<3x1x16xf32> to vector<3x16x16xf32>
    %49 = arith.select %46, %48, %44 : vector<3x16x16xi1>, vector<3x16x16xf32>
    %50 = vector.extract_strided_slice %20 {offsets = [0, 0, 0], sizes = [3, 1, 16], strides = [1, 1, 1]} : vector<3x2x16xf32> to vector<3x1x16xf32>
    %c1_i32_22 = arith.constant 1 : i32
    %51 = tpu.dynamic_rotate %49 by %c1_i32_22 dim 1 : vector<3x16x16xf32>, i32 -> vector<3x16x16xf32>
    %52 = vector.shape_cast %28 : vector<16x16xi1> to vector<1x16x16xi1>
    %53 = vector.broadcast %52 : vector<1x16x16xi1> to vector<3x16x16xi1>
    %54 = vector.shape_cast %50 : vector<3x1x16xf32> to vector<3x1x16xf32>
    %55 = vector.broadcast %54 : vector<3x1x16xf32> to vector<3x16x16xf32>
    %56 = arith.select %53, %55, %51 : vector<3x16x16xi1>, vector<3x16x16xf32>
    %c15_i32_23 = arith.constant 15 : i32
    %57 = tpu.dynamic_rotate %35 by %c15_i32_23 dim 2 : vector<3x16x16xf32>, i32 -> vector<3x16x16xf32>
    %cst_24 = arith.constant 0.000000e+00 : f32
    %58 = vector.shape_cast %24 : vector<16x16xi1> to vector<1x16x16xi1>
    %59 = vector.broadcast %58 : vector<1x16x16xi1> to vector<3x16x16xi1>
    %60 = vector.broadcast %cst_24 : f32 to vector<3x16x16xf32>
    %61 = arith.select %59, %57, %60 : vector<3x16x16xi1>, vector<3x16x16xf32>
    %c1_i32_25 = arith.constant 1 : i32
    %62 = tpu.dynamic_rotate %35 by %c1_i32_25 dim 2 : vector<3x16x16xf32>, i32 -> vector<3x16x16xf32>
    %cst_26 = arith.constant 0.000000e+00 : f32
    %63 = vector.shape_cast %26 : vector<16x16xi1> to vector<1x16x16xi1>
    %64 = vector.broadcast %63 : vector<1x16x16xi1> to vector<3x16x16xi1>
    %65 = vector.broadcast %cst_26 : f32 to vector<3x16x16xf32>
    %66 = arith.select %64, %62, %65 : vector<3x16x16xi1>, vector<3x16x16xf32>
    %67 = arith.subf %61, %66 : vector<3x16x16xf32>
    %cst_27 = arith.constant 5.000000e-01 : f32
    %68 = vector.broadcast %cst_27 : f32 to vector<3x16x16xf32>
    %69 = arith.mulf %67, %68 : vector<3x16x16xf32>
    %70 = arith.mulf %69, %69 : vector<3x16x16xf32>
    %71 = arith.subf %42, %17 : vector<3x16x16xf32>
    %cst_28 = arith.constant 5.000000e-01 : f32
    %72 = vector.broadcast %cst_28 : f32 to vector<3x16x16xf32>
    %73 = arith.mulf %71, %72 : vector<3x16x16xf32>
    %74 = arith.mulf %73, %73 : vector<3x16x16xf32>
    %75 = arith.addf %70, %74 : vector<3x16x16xf32>
    %cst_29 = arith.constant 9.99999997E-7 : f32
    %76 = vector.broadcast %cst_29 : f32 to vector<3x16x16xf32>
    %77 = arith.addf %75, %76 : vector<3x16x16xf32>
    %78 = math.sqrt %77 : vector<3x16x16xf32>
    %c15_i32_30 = arith.constant 15 : i32
    %79 = tpu.dynamic_rotate %49 by %c15_i32_30 dim 2 : vector<3x16x16xf32>, i32 -> vector<3x16x16xf32>
    %cst_31 = arith.constant 0.000000e+00 : f32
    %80 = vector.shape_cast %24 : vector<16x16xi1> to vector<1x16x16xi1>
    %81 = vector.broadcast %80 : vector<1x16x16xi1> to vector<3x16x16xi1>
    %82 = vector.broadcast %cst_31 : f32 to vector<3x16x16xf32>
    %83 = arith.select %81, %79, %82 : vector<3x16x16xi1>, vector<3x16x16xf32>
    %c1_i32_32 = arith.constant 1 : i32
    %84 = tpu.dynamic_rotate %49 by %c1_i32_32 dim 2 : vector<3x16x16xf32>, i32 -> vector<3x16x16xf32>
    %cst_33 = arith.constant 0.000000e+00 : f32
    %85 = vector.shape_cast %26 : vector<16x16xi1> to vector<1x16x16xi1>
    %86 = vector.broadcast %85 : vector<1x16x16xi1> to vector<3x16x16xi1>
    %87 = vector.broadcast %cst_33 : f32 to vector<3x16x16xf32>
    %88 = arith.select %86, %84, %87 : vector<3x16x16xi1>, vector<3x16x16xf32>
    %89 = arith.subf %83, %88 : vector<3x16x16xf32>
    %cst_34 = arith.constant 5.000000e-01 : f32
    %90 = vector.broadcast %cst_34 : f32 to vector<3x16x16xf32>
    %91 = arith.mulf %89, %90 : vector<3x16x16xf32>
    %92 = arith.mulf %91, %91 : vector<3x16x16xf32>
    %93 = arith.subf %56, %18 : vector<3x16x16xf32>
    %cst_35 = arith.constant 5.000000e-01 : f32
    %94 = vector.broadcast %cst_35 : f32 to vector<3x16x16xf32>
    %95 = arith.mulf %93, %94 : vector<3x16x16xf32>
    %96 = arith.mulf %95, %95 : vector<3x16x16xf32>
    %97 = arith.addf %92, %96 : vector<3x16x16xf32>
    %cst_36 = arith.constant 9.99999997E-7 : f32
    %98 = vector.broadcast %cst_36 : f32 to vector<3x16x16xf32>
    %99 = arith.addf %97, %98 : vector<3x16x16xf32>
    %100 = math.sqrt %99 : vector<3x16x16xf32>
    %101 = arith.subf %78, %100 : vector<3x16x16xf32>
    %102 = math.absf %101 : vector<3x16x16xf32>
    %c0_i32_37 = arith.constant 0 : i32
    %103 = arith.cmpi eq, %arg1, %c0_i32_37 : i32
    %104 = vector.broadcast %103 : i1 to vector<16x16xi1>
    %105 = arith.andi %104, %28 : vector<16x16xi1>
    %cst_38 = arith.constant 0.000000e+00 : f32
    %106 = vector.shape_cast %105 : vector<16x16xi1> to vector<1x16x16xi1>
    %107 = vector.broadcast %106 : vector<1x16x16xi1> to vector<3x16x16xi1>
    %108 = vector.broadcast %cst_38 : f32 to vector<3x16x16xf32>
    %109 = arith.select %107, %108, %102 : vector<3x16x16xi1>, vector<3x16x16xf32>
    %c0_39 = arith.constant 0 : index
    %c0_40 = arith.constant 0 : index
    %110 = vector.load %arg7[%c0_39, %c0_40] : memref<1x128xf32, #tpu.memory_space<vmem>>, vector<1x128xf32>
    %111 = vector.shape_cast %109 : vector<3x16x16xf32> to vector<1x3x16x16xf32>
    %cst_41 = arith.constant dense<0.000000e+00> : vector<1xf32>
    %112 = vector.multi_reduction <add>, %111, %cst_41 [1, 2, 3] : vector<1x3x16x16xf32> to vector<1xf32>
    %113 = vector.shape_cast %112 : vector<1xf32> to vector<1x1x1x1xf32>
    %114 = vector.extract %113[0, 0, 0, 0] : f32 from vector<1x1x1x1xf32>
    %115 = vector.broadcast %114 : f32 to vector<1x128xf32>
    %116 = arith.addf %110, %115 : vector<1x128xf32>
    %c0_42 = arith.constant 0 : index
    %c0_43 = arith.constant 0 : index
    %117 = vector.load %arg7[%c0_42, %c0_43] : memref<1x128xf32, #tpu.memory_space<vmem>>, vector<1x128xf32>
    tpu.vector_store %arg7[%c0_42, %c0_43], %116 {strides = array<i32>} : memref<1x128xf32, #tpu.memory_space<vmem>>, vector<1x128xf32>,
    %118 = vector.extract_strided_slice %17 {offsets = [0, 14, 0], sizes = [3, 2, 16], strides = [1, 1, 1]} : vector<3x16x16xf32> to vector<3x2x16xf32>
    %c0_44 = arith.constant 0 : index
    %c0_45 = arith.constant 0 : index
    %c0_46 = arith.constant 0 : index
    %119 = vector.load %arg8[%c0_44, %c0_45, %c0_46] : memref<3x2x16xf32, #tpu.memory_space<vmem>>, vector<3x2x16xf32>
    tpu.vector_store %arg8[%c0_44, %c0_45, %c0_46], %118 {strides = array<i32>} : memref<3x2x16xf32, #tpu.memory_space<vmem>>, vector<3x2x16xf32>,
    %120 = vector.extract_strided_slice %18 {offsets = [0, 14, 0], sizes = [3, 2, 16], strides = [1, 1, 1]} : vector<3x16x16xf32> to vector<3x2x16xf32>
    %c0_47 = arith.constant 0 : index
    %c0_48 = arith.constant 0 : index
    %c0_49 = arith.constant 0 : index
    %121 = vector.load %arg9[%c0_47, %c0_48, %c0_49] : memref<3x2x16xf32, #tpu.memory_space<vmem>>, vector<3x2x16xf32>
    tpu.vector_store %arg9[%c0_47, %c0_48, %c0_49], %120 {strides = array<i32>} : memref<3x2x16xf32, #tpu.memory_space<vmem>>, vector<3x2x16xf32>,
    %c0_i32_50 = arith.constant 0 : i32
    %122 = arith.cmpi eq, %arg1, %c0_i32_50 : i32
    %123 = arith.extui %122 : i1 to i32
    %c0_i32_51 = arith.constant 0 : i32
    %124 = arith.cmpi ne, %123, %c0_i32_51 : i32
    scf.if %124 {
      %125 = tpu.iota {dimensions = array<i32: 1>} : vector<1x16xi32>
      %c15_i32_52 = arith.constant 15 : i32
      %126 = vector.broadcast %c15_i32_52 : i32 to vector<1x16xi32>
      %127 = arith.cmpi slt, %125, %126 : vector<1x16xi32>
      %c0_i32_53 = arith.constant 0 : i32
      %128 = vector.broadcast %c0_i32_53 : i32 to vector<1x16xi32>
      %129 = arith.cmpi sgt, %125, %128 : vector<1x16xi32>
      %130 = vector.extract_strided_slice %17 {offsets = [0, 15, 0], sizes = [3, 1, 16], strides = [1, 1, 1]} : vector<3x16x16xf32> to vector<3x1x16xf32>
      %131 = vector.extract_strided_slice %17 {offsets = [0, 14, 0], sizes = [3, 1, 16], strides = [1, 1, 1]} : vector<3x16x16xf32> to vector<3x1x16xf32>
      %c15_i32_54 = arith.constant 15 : i32
      %132 = tpu.dynamic_rotate %130 by %c15_i32_54 dim 2 : vector<3x1x16xf32>, i32 -> vector<3x1x16xf32>
      %cst_55 = arith.constant 0.000000e+00 : f32
      %133 = vector.shape_cast %127 : vector<1x16xi1> to vector<1x1x16xi1>
      %134 = vector.broadcast %133 : vector<1x1x16xi1> to vector<3x1x16xi1>
      %135 = vector.broadcast %cst_55 : f32 to vector<3x1x16xf32>
      %136 = arith.select %134, %132, %135 : vector<3x1x16xi1>, vector<3x1x16xf32>
      %c1_i32_56 = arith.constant 1 : i32
      %137 = tpu.dynamic_rotate %130 by %c1_i32_56 dim 2 : vector<3x1x16xf32>, i32 -> vector<3x1x16xf32>
      %cst_57 = arith.constant 0.000000e+00 : f32
      %138 = vector.shape_cast %129 : vector<1x16xi1> to vector<1x1x16xi1>
      %139 = vector.broadcast %138 : vector<1x1x16xi1> to vector<3x1x16xi1>
      %140 = vector.broadcast %cst_57 : f32 to vector<3x1x16xf32>
      %141 = arith.select %139, %137, %140 : vector<3x1x16xi1>, vector<3x1x16xf32>
      %142 = arith.subf %136, %141 : vector<3x1x16xf32>
      %cst_58 = arith.constant 5.000000e-01 : f32
      %143 = vector.broadcast %cst_58 : f32 to vector<3x1x16xf32>
      %144 = arith.mulf %142, %143 : vector<3x1x16xf32>
      %145 = arith.mulf %144, %144 : vector<3x1x16xf32>
      %cst_59 = arith.constant 5.000000e-01 : f32
      %146 = vector.broadcast %cst_59 : f32 to vector<3x1x16xf32>
      %147 = arith.mulf %131, %146 : vector<3x1x16xf32>
      %148 = arith.mulf %147, %147 : vector<3x1x16xf32>
      %149 = arith.addf %145, %148 : vector<3x1x16xf32>
      %cst_60 = arith.constant 9.99999997E-7 : f32
      %150 = vector.broadcast %cst_60 : f32 to vector<3x1x16xf32>
      %151 = arith.addf %149, %150 : vector<3x1x16xf32>
      %152 = math.sqrt %151 : vector<3x1x16xf32>
      %153 = vector.extract_strided_slice %18 {offsets = [0, 15, 0], sizes = [3, 1, 16], strides = [1, 1, 1]} : vector<3x16x16xf32> to vector<3x1x16xf32>
      %154 = vector.extract_strided_slice %18 {offsets = [0, 14, 0], sizes = [3, 1, 16], strides = [1, 1, 1]} : vector<3x16x16xf32> to vector<3x1x16xf32>
      %c15_i32_61 = arith.constant 15 : i32
      %155 = tpu.dynamic_rotate %153 by %c15_i32_61 dim 2 : vector<3x1x16xf32>, i32 -> vector<3x1x16xf32>
      %cst_62 = arith.constant 0.000000e+00 : f32
      %156 = vector.shape_cast %127 : vector<1x16xi1> to vector<1x1x16xi1>
      %157 = vector.broadcast %156 : vector<1x1x16xi1> to vector<3x1x16xi1>
      %158 = vector.broadcast %cst_62 : f32 to vector<3x1x16xf32>
      %159 = arith.select %157, %155, %158 : vector<3x1x16xi1>, vector<3x1x16xf32>
      %c1_i32_63 = arith.constant 1 : i32
      %160 = tpu.dynamic_rotate %153 by %c1_i32_63 dim 2 : vector<3x1x16xf32>, i32 -> vector<3x1x16xf32>
      %cst_64 = arith.constant 0.000000e+00 : f32
      %161 = vector.shape_cast %129 : vector<1x16xi1> to vector<1x1x16xi1>
      %162 = vector.broadcast %161 : vector<1x1x16xi1> to vector<3x1x16xi1>
      %163 = vector.broadcast %cst_64 : f32 to vector<3x1x16xf32>
      %164 = arith.select %162, %160, %163 : vector<3x1x16xi1>, vector<3x1x16xf32>
      %165 = arith.subf %159, %164 : vector<3x1x16xf32>
      %cst_65 = arith.constant 5.000000e-01 : f32
      %166 = vector.broadcast %cst_65 : f32 to vector<3x1x16xf32>
      %167 = arith.mulf %165, %166 : vector<3x1x16xf32>
      %168 = arith.mulf %167, %167 : vector<3x1x16xf32>
      %cst_66 = arith.constant 5.000000e-01 : f32
      %169 = vector.broadcast %cst_66 : f32 to vector<3x1x16xf32>
      %170 = arith.mulf %154, %169 : vector<3x1x16xf32>
      %171 = arith.mulf %170, %170 : vector<3x1x16xf32>
      %172 = arith.addf %168, %171 : vector<3x1x16xf32>
      %cst_67 = arith.constant 9.99999997E-7 : f32
      %173 = vector.broadcast %cst_67 : f32 to vector<3x1x16xf32>
      %174 = arith.addf %172, %173 : vector<3x1x16xf32>
      %175 = math.sqrt %174 : vector<3x1x16xf32>
      %176 = arith.subf %152, %175 : vector<3x1x16xf32>
      %177 = math.absf %176 : vector<3x1x16xf32>
      %178 = vector.shape_cast %177 : vector<3x1x16xf32> to vector<1x3x1x16xf32>
      %cst_68 = arith.constant dense<0.000000e+00> : vector<1xf32>
      %179 = vector.multi_reduction <add>, %178, %cst_68 [1, 2, 3] : vector<1x3x1x16xf32> to vector<1xf32>
      %180 = vector.shape_cast %179 : vector<1xf32> to vector<1x1x1x1xf32>
      %181 = vector.extract %180[0, 0, 0, 0] : f32 from vector<1x1x1x1xf32>
      %c0_69 = arith.constant 0 : index
      %c0_70 = arith.constant 0 : index
      %182 = vector.load %arg6[%c0_69, %c0_70] : memref<1x128xf32, #tpu.memory_space<vmem>>, vector<1x128xf32>
      %cst_71 = arith.constant 9.765625E-4 : f32
      %183 = vector.broadcast %cst_71 : f32 to vector<1x128xf32>
      %184 = arith.mulf %182, %183 : vector<1x128xf32>
      %185 = vector.shape_cast %184 : vector<1x128xf32> to vector<1x1x128xf32>
      %186 = vector.shape_cast %185 : vector<1x1x128xf32> to vector<1x1x128xf32>
      %187 = vector.broadcast %186 : vector<1x1x128xf32> to vector<1x8x128xf32>
      %c0_72 = arith.constant 0 : index
      %c0_73 = arith.constant 0 : index
      %c0_74 = arith.constant 0 : index
      %188 = vector.load %arg4[%c0_72, %c0_73, %c0_74] : memref<1x8x128xf32, #tpu.memory_space<vmem>>, vector<1x8x128xf32>
      tpu.vector_store %arg4[%c0_72, %c0_73, %c0_74], %187 {strides = array<i32>} : memref<1x8x128xf32, #tpu.memory_space<vmem>>, vector<1x8x128xf32>,
      %c0_75 = arith.constant 0 : index
      %c0_76 = arith.constant 0 : index
      %189 = vector.load %arg7[%c0_75, %c0_76] : memref<1x128xf32, #tpu.memory_space<vmem>>, vector<1x128xf32>
      %190 = vector.broadcast %181 : f32 to vector<1x128xf32>
      %191 = arith.addf %189, %190 : vector<1x128xf32>
      %192 = vector.shape_cast %191 : vector<1x128xf32> to vector<1x1x128xf32>
      %193 = vector.shape_cast %192 : vector<1x1x128xf32> to vector<1x1x128xf32>
      %194 = vector.broadcast %193 : vector<1x1x128xf32> to vector<1x8x128xf32>
      %c0_77 = arith.constant 0 : index
      %c0_78 = arith.constant 0 : index
      %c0_79 = arith.constant 0 : index
      %195 = vector.load %arg5[%c0_77, %c0_78, %c0_79] : memref<1x8x128xf32, #tpu.memory_space<vmem>>, vector<1x8x128xf32>
      tpu.vector_store %arg5[%c0_77, %c0_78, %c0_79], %194 {strides = array<i32>} : memref<1x8x128xf32, #tpu.memory_space<vmem>>, vector<1x8x128xf32>,
    } else {
    }
    return
  }
  func.func @transform_0(%arg0: i32, %arg1: i32) -> (i32, i32, i32, i32) {
    %c0_i32 = arith.constant 0 : i32
    %c0_i32_0 = arith.constant 0 : i32
    %c0_i32_1 = arith.constant 0 : i32
    return %arg0, %c0_i32, %arg1, %c0_i32_0 : i32, i32, i32, i32
  }
  func.func @transform_1(%arg0: i32, %arg1: i32) -> (i32, i32, i32, i32) {
    %c0_i32 = arith.constant 0 : i32
    %c0_i32_0 = arith.constant 0 : i32
    %c0_i32_1 = arith.constant 0 : i32
    return %arg0, %c0_i32, %arg1, %c0_i32_0 : i32, i32, i32, i32
  }
  func.func @transform_2(%arg0: i32, %arg1: i32) -> (i32, i32, i32) {
    %c0_i32 = arith.constant 0 : i32
    %c0_i32_0 = arith.constant 0 : i32
    %c0_i32_1 = arith.constant 0 : i32
    return %arg0, %c0_i32, %c0_i32_0 : i32, i32, i32
  }
  func.func @transform_3(%arg0: i32, %arg1: i32) -> (i32, i32, i32) {
    %c0_i32 = arith.constant 0 : i32
    %c0_i32_0 = arith.constant 0 : i32
    %c0_i32_1 = arith.constant 0 : i32
    return %arg0, %c0_i32, %c0_i32_0 : i32, i32, i32
  }
}

</mosaic_0001>

<llo_original>
// kernel: image_loss.1
$region0: #{image_loss.1}
  #allocation0 [shape = 'u32[]', space=smem, size = 0x4, offset = 0x4, fixed_abs, tag = 'smem constant byte address 0x4 - core index']
  #allocation1 [shape = 'u32[144,128]{1,0:T(1,128)}', space=vmem, size = 0x12000, scoped, tag = 'internal scratch']
  #allocation2 [shape = 'f32[1,128]{1,0:T(1,128)}', space=vmem, size = 0x200, scoped, tag = 'scratch operand']
  #allocation3 [shape = 'f32[1,128]{1,0:T(1,128)}', space=vmem, size = 0x200, scoped, tag = 'scratch operand']
  #allocation4 [shape = 'f32[3,2,16]{2,1,0:T(2,128)}', space=vmem, size = 0xc00, scoped, tag = 'scratch operand']
  #allocation5 [shape = 'f32[3,2,16]{2,1,0:T(2,128)}', space=vmem, size = 0xc00, scoped, tag = 'scratch operand']
  %s0 = inlined_call_operand.hbm [shape: f32[2,4,16,16], index: 0, kind: input, shape index: {}]
  %s1 = inlined_call_operand.hbm [shape: f32[2,4,16,16], index: 1, kind: input, shape index: {}]
  %s2 = inlined_call_operand.vmem [shape: f32[2,8,128], index: 2, kind: output, shape index: {0}]
  %s3 = inlined_call_operand.vmem [shape: f32[2,8,128], index: 3, kind: output, shape index: {1}]
  %4 = xla_tuple %s2, %s3
  %s5 = sld [smem:[#allocation0]]
  $region65: #{image_loss.1} parent=0
    _
  %s7 = ssub.s32 1, %s5
  %s8 = scalar_select 0, %s7, %s5
  $region1: #{image_loss.1} parent=0
    #allocation6 [shape = 'u8[65536]{0}', space=vmem, size = 0x10000, scoped, tag = 'input window, operand 0']
    #allocation7 [shape = 's32[2]{0}', space=sflag, size = 0x8, scoped, tag = 'scoped memory for image_loss.1']
    #allocation8 [shape = 'u8[65536]{0}', space=vmem, size = 0x10000, scoped, tag = 'input window, operand 1']
    #allocation9 [shape = 's32[2]{0}', space=sflag, size = 0x8, scoped, tag = 'scoped memory for image_loss.1']
    %9 = vsyncpa [#allocation7], 0
    %s10 = scalar_lea.sflag [#allocation7], 1
    %11 = vsyncpa %s10, 0
    %12 = vsyncpa [#allocation9], 0
    %s13 = scalar_lea.sflag [#allocation9], 1
    %14 = vsyncpa %s13, 0
    loop: start=0, step=1, limit=4
    $region2: #{image_loss.1} parent=1 // loop_pre_header
      _
    $region3: #{image_loss.1} parent=1 // loop_header
      %s16 = sphi 0, %s20
      %p17 = scmp.ge.s32.totalorder %s16, 4
      %s23 = sphi 0, %s35
      %s24 = sphi 0, %s31
      %s25 = sphi 0, %s23
      %s26 = sphi 0, %s24
      %s27 = sphi 0, %s25
      %s28 = sphi 0, %s26
      %s40 = sphi 0, %s42
      %s43 = sphi 0, %s40
      %s44 = sphi 0, %s43
      %s60 = sphi 0, %s44
      %s68 = sphi 0, %s70
      %s71 = sphi 0, %s68
      %s72 = sphi 0, %s71
      %s88 = sphi 0, %s72
      %s94 = sphi 0, %s96
      %s97 = sphi 0, %s94
      %s98 = sphi 0, %s97
      %s114 = sphi 0, %s98
      %s120 = sphi 0, %s122
      %s123 = sphi 0, %s120
      %s124 = sphi 0, %s123
      %s140 = sphi 0, %s124
    $region4: #{image_loss.1} parent=1 // loop_header_branch
      %19 = sbr.rel (%p17) target = $region8
    $region5: #{image_loss.1} parent=1 // loop_body
      %s21 = ssub.s32 %s16, 1
      %s22 = ssub.s32 %s16, 2
      %s29 = sadd.s32 1, %s24
      %p30 = scmp.ge.s32.totalorder %s29, 1
      %s31 = scalar_select %p30, 0, %s29
      %s32 = sadd.s32 1, %s23
      %s33 = scalar_select %p30, %s32, %s23
      %p34 = scmp.ge.s32.totalorder %s33, 2
      %s35 = scalar_select %p34, 0, %s33
      %s36 = ssub.s32 %s23, %s35
      %s37 = ssub.s32 %s24, %s31
      %s38 = sor.u32 %s36, %s37
      %p39 = scmp.eq.s32.totalorder %s38, 0
      %s41 = sadd.s32 %s40, 1
      %s42 = scalar_select %p39, %s40, %s41
      %p45 = pneg %p39
      %p46 = scmp.eq.s32.totalorder %s16, 1
      %p47 = por %p45, %p46
      %p48 = scmp.ne.s32.totalorder %s40, %s43
      %p49 = scmp.eq.s32.totalorder %s16, 0
      %p50 = por %p48, %p49
      %p51 = scmp.ne.s32.totalorder %s40, %s43
      %p52 = scmp.eq.s32.totalorder %s21, 1
      %p53 = por %p51, %p52
      %p54 = scmp.ne.s32.totalorder %s43, %s44
      %p55 = scmp.eq.s32.totalorder %s21, 0
      %p56 = por %p54, %p55
      %p57 = scmp.ne.s32.totalorder %s43, %s44
      %p58 = scmp.eq.s32.totalorder %s22, 1
      %p59 = por %p57, %p58
      %p61 = scmp.ne.s32.totalorder %s44, %s60
      %p62 = scmp.eq.s32.totalorder %s22, 0
      %p63 = por %p61, %p62
      %s64 = ssub.s32 %s23, %s35
      %s65 = ssub.s32 %s24, %s31
      %s66 = sor.u32 %s64, %s65
      %p67 = scmp.eq.s32.totalorder %s66, 0
      %s69 = sadd.s32 %s68, 1
      %s70 = scalar_select %p67, %s68, %s69
      %p73 = pneg %p67
      %p74 = scmp.eq.s32.totalorder %s16, 1
      %p75 = por %p73, %p74
      %p76 = scmp.ne.s32.totalorder %s68, %s71
      %p77 = scmp.eq.s32.totalorder %s16, 0
      %p78 = por %p76, %p77
      %p79 = scmp.ne.s32.totalorder %s68, %s71
      %p80 = scmp.eq.s32.totalorder %s21, 1
      %p81 = por %p79, %p80
      %p82 = scmp.ne.s32.totalorder %s71, %s72
      %p83 = scmp.eq.s32.totalorder %s21, 0
      %p84 = por %p82, %p83
      %p85 = scmp.ne.s32.totalorder %s71, %s72
      %p86 = scmp.eq.s32.totalorder %s22, 1
      %p87 = por %p85, %p86
      %p89 = scmp.ne.s32.totalorder %s72, %s88
      %p90 = scmp.eq.s32.totalorder %s22, 0
      %p91 = por %p89, %p90
      %s92 = ssub.s32 %s23, %s35
      %p93 = scmp.eq.s32.totalorder %s92, 0
      %s95 = sadd.s32 %s94, 1
      %s96 = scalar_select %p93, %s94, %s95
      %p99 = pneg %p93
      %p100 = scmp.eq.s32.totalorder %s16, 1
      %p101 = por %p99, %p100
      %p102 = scmp.ne.s32.totalorder %s94, %s97
      %p103 = scmp.eq.s32.totalorder %s16, 0
      %p104 = por %p102, %p103
      %p105 = scmp.ne.s32.totalorder %s94, %s97
      %p106 = scmp.eq.s32.totalorder %s21, 1
      %p107 = por %p105, %p106
      %p108 = scmp.ne.s32.totalorder %s97, %s98
      %p109 = scmp.eq.s32.totalorder %s21, 0
      %p110 = por %p108, %p109
      %p111 = scmp.ne.s32.totalorder %s97, %s98
      %p112 = scmp.eq.s32.totalorder %s22, 1
      %p113 = por %p111, %p112
      %p115 = scmp.ne.s32.totalorder %s98, %s114
      %p116 = scmp.eq.s32.totalorder %s22, 0
      %p117 = por %p115, %p116
      %s118 = ssub.s32 %s23, %s35
      %p119 = scmp.eq.s32.totalorder %s118, 0
      %s121 = sadd.s32 %s120, 1
      %s122 = scalar_select %p119, %s120, %s121
      %p125 = pneg %p119
      %p126 = scmp.eq.s32.totalorder %s16, 1
      %p127 = por %p125, %p126
      %p128 = scmp.ne.s32.totalorder %s120, %s123
      %p129 = scmp.eq.s32.totalorder %s16, 0
      %p130 = por %p128, %p129
      %p131 = scmp.ne.s32.totalorder %s120, %s123
      %p132 = scmp.eq.s32.totalorder %s21, 1
      %p133 = por %p131, %p132
      %p134 = scmp.ne.s32.totalorder %s123, %s124
      %p135 = scmp.eq.s32.totalorder %s21, 0
      %p136 = por %p134, %p135
      %p137 = scmp.ne.s32.totalorder %s123, %s124
      %p138 = scmp.eq.s32.totalorder %s22, 1
      %p139 = por %p137, %p138
      %p141 = scmp.ne.s32.totalorder %s124, %s140
      %p142 = scmp.eq.s32.totalorder %s22, 0
      %p143 = por %p141, %p142
      %p144 = scmp.le.s32.totalorder 1, %s16
      %p145 = scmp.lt.s32.totalorder %s16, 3
      %p146 = pnand %p144, %p145
      %p147 = pneg %p146
      // Predicated region
      $region9: #{image_loss.1} parent=5 // pred_check
        _
      $region10: #{image_loss.1} parent=5 // pred_check_branch
        %149 = sbr.rel (%p146) target = $region12
      $region11: #{image_loss.1} parent=5 // pred_region
        %s150 = ssub.s32 %s16, 1
      $region12: #{image_loss.1} parent=5 // pred_fallthru
        _
      %p151 = scmp.lt.s32.totalorder %s16, 2
      // Predicated region
      $region13: #{image_loss.1} parent=5 // pred_check
        %p152 = pneg %p151
      $region14: #{image_loss.1} parent=5 // pred_check_branch
        %154 = sbr.rel (%p152) target = $region16
      $region15: #{image_loss.1} parent=5 // pred_region
        // Predicated region
        $region17: #{image_loss.1} parent=15 // pred_check
          %p155 = pneg %p50
        $region18: #{image_loss.1} parent=15 // pred_check_branch
          %157 = sbr.rel (%p155) target = $region20
        $region19: #{image_loss.1} parent=15 // pred_region
          %s158 = sand.u32 %s40, 1
          %s159 = scalar_lea.sflag [#allocation7], %s158
          %s160 = sand.u32 %s40, 1
          %s161 = smul.addr %s160, 64
          %s162 = scalar_lea.vmem [#allocation6], %s161
          %s163 = smul.u32 2, %s24
          %s165 = ssub.s32 1024, 1024
          %166 = vsyncadd %s159, %s165
          %s167 = smul.addr %s23, 8
          %s168 = sadd.s32 %s163, %s167
          %s169 = smul.addr %s168, 128
          %s170 = scalar_lea.hbm %s0, %s169
          %s171 = sshll.u32 %s162, 4
          %s172 = int_to_ptr.vmem [resolvable:$true] %s171
          %177 = dma.hbm_to_vmem [thread:$0]  %s170, 1024, %s172, %s159, 128, 128, 8
        $region20: #{image_loss.1} parent=15 // pred_fallthru
          _
        // Predicated region
        $region21: #{image_loss.1} parent=15 // pred_check
          %p178 = pneg %p78
        $region22: #{image_loss.1} parent=15 // pred_check_branch
          %180 = sbr.rel (%p178) target = $region24
        $region23: #{image_loss.1} parent=15 // pred_region
          %s181 = sand.u32 %s68, 1
          %s182 = scalar_lea.sflag [#allocation9], %s181
          %s183 = sand.u32 %s68, 1
          %s184 = smul.addr %s183, 64
          %s185 = scalar_lea.vmem [#allocation8], %s184
          %s186 = smul.u32 2, %s24
          %s188 = ssub.s32 1024, 1024
          %189 = vsyncadd %s182, %s188
          %s190 = smul.addr %s23, 8
          %s191 = sadd.s32 %s186, %s190
          %s192 = smul.addr %s191, 128
          %s193 = scalar_lea.hbm %s1, %s192
          %s194 = sshll.u32 %s185, 4
          %s195 = int_to_ptr.vmem [resolvable:$true] %s194
          %200 = dma.hbm_to_vmem [thread:$0]  %s193, 1024, %s195, %s182, 128, 128, 8
        $region24: #{image_loss.1} parent=15 // pred_fallthru
          _
      $region16: #{image_loss.1} parent=5 // pred_fallthru
        _
      %p201 = scmp.le.s32.totalorder 1, %s16
      %p202 = scmp.lt.s32.totalorder %s16, 3
      %p203 = pnand %p201, %p202
      %p204 = pneg %p203
      // Predicated region
      $region25: #{image_loss.1} parent=5 // pred_check
        _
      $region26: #{image_loss.1} parent=5 // pred_check_branch
        %206 = sbr.rel (%p203) target = $region28
      $region27: #{image_loss.1} parent=5 // pred_region
        %s207 = ssub.s32 %s16, 1
        %s208 = sand.u32 %s43, 1
        %s209 = scalar_lea.sflag [#allocation7], %s208
        %s210 = sand.u32 %s43, 1
        %s211 = smul.addr %s210, 64
        %s212 = scalar_lea.vmem [#allocation6], %s211
        // Predicated region
        $region29: #{image_loss.1} parent=27 // pred_check
          %p213 = pneg %p56
        $region30: #{image_loss.1} parent=27 // pred_check_branch
          %215 = sbr.rel (%p213) target = $region32
        $region31: #{image_loss.1} parent=27 // pred_region
          %216 = dma.done %s209, 1024
        $region32: #{image_loss.1} parent=27 // pred_fallthru
          _
        %s217 = sand.u32 %s71, 1
        %s218 = scalar_lea.sflag [#allocation9], %s217
        %s219 = sand.u32 %s71, 1
        %s220 = smul.addr %s219, 64
        %s221 = scalar_lea.vmem [#allocation8], %s220
        // Predicated region
        $region33: #{image_loss.1} parent=27 // pred_check
          %p222 = pneg %p84
        $region34: #{image_loss.1} parent=27 // pred_check_branch
          %224 = sbr.rel (%p222) target = $region36
        $region35: #{image_loss.1} parent=27 // pred_region
          %225 = dma.done %s218, 1024
        $region36: #{image_loss.1} parent=27 // pred_fallthru
          _
        %s226 = sand.u32 %s43, 1
        %s227 = scalar_lea.sflag [#allocation7], %s226
        %s228 = sand.u32 %s43, 1
        %s229 = smul.addr %s228, 64
        %s230 = scalar_lea.vmem [#allocation6], %s229
        %p231 = pneg %p56
        %p232 = pneg %p53
        %s233 = sand.u32 %s71, 1
        %s234 = scalar_lea.sflag [#allocation9], %s233
        %s235 = sand.u32 %s71, 1
        %s236 = smul.addr %s235, 64
        %s237 = scalar_lea.vmem [#allocation8], %s236
        %p238 = pneg %p84
        %p239 = pneg %p81
        %p240 = pneg %p110
        %p241 = pneg %p107
        %p242 = scmp.lt.s32.totalorder %s25, 1
        %s243 = scalar_select %p242, %s25, 1
        %s244 = smul.addr %s243, 8
        %s245 = scalar_lea.vmem %s2, %s244
        %p246 = pneg %p136
        %p247 = pneg %p133
        %p248 = scmp.lt.s32.totalorder %s25, 1
        %s249 = scalar_select %p248, %s25, 1
        %s250 = smul.addr %s249, 8
        %s251 = scalar_lea.vmem %s3, %s250
        %s252 = smul.u32 2, %s26
        %s253 = smul.u32 2, %s26
        %p254 = scmp.lt.s32.totalorder %s25, 1
        %s255 = scalar_select %p254, %s25, 1
        %s256 = smul.addr %s255, 8
        %s257 = scalar_lea.vmem %s2, %s256
        %p258 = scmp.lt.s32.totalorder %s25, 1
        %s259 = scalar_select %p258, %s25, 1
        %s260 = smul.addr %s259, 8
        %s261 = scalar_lea.vmem %s3, %s260
        %p262 = scmp.eq.s32.totalorder %s26, 0
        // Predicated region
        $region37: #{image_loss.1} parent=27 // pred_check
          %p263 = pneg %p262
        $region38: #{image_loss.1} parent=27 // pred_check_branch
          %265 = sbr.rel (%p263) target = $region40
        $region39: #{image_loss.1} parent=27 // pred_region
          %266 = vst [vmem:[#allocation2] sm:$0x1] 0.0
          %267 = vst [vmem:[#allocation3] sm:$0x1] 0.0
          %vm268 = vcmask 123904
          %269 = vst.msk [vmem:[#allocation4] sm:$0x3] %vm268, 0.0
          %270 = vst.msk [vmem:[#allocation4 + $0x2] sm:$0x3] %vm268, 0.0
          %271 = vst.msk [vmem:[#allocation4 + $0x4] sm:$0x3] %vm268, 0.0
          %272 = vst.msk [vmem:[#allocation5] sm:$0x3] %vm268, 0.0
          %273 = vst.msk [vmem:[#allocation5 + $0x2] sm:$0x3] %vm268, 0.0
          %274 = vst.msk [vmem:[#allocation5 + $0x4] sm:$0x3] %vm268, 0.0
        $region40: #{image_loss.1} parent=27 // pred_fallthru
          _
        %v275 = vld [vmem:[%s212] sm:$0xff]
        %v276 = vld [vmem:[%s212 + $0x8] sm:$0xff]
        %v277 = vld [vmem:[%s212 + $0x10] sm:$0xff]
        %v278 = vld [vmem:[%s212 + $0x18] sm:$0xff]
        %v279 = vld [vmem:[%s212 + $0x20] sm:$0xff]
        %v280 = vld [vmem:[%s212 + $0x28] sm:$0xff]
        %v281 = vld [vmem:[%s212 + $0x30] sm:$0xff]
        %v282 = vld [vmem:[%s212 + $0x38] sm:$0xff]
        %v283 = vld [vmem:[%s221] sm:$0xff]
        %v284 = vld [vmem:[%s221 + $0x8] sm:$0xff]
        %v285 = vld [vmem:[%s221 + $0x10] sm:$0xff]
        %v286 = vld [vmem:[%s221 + $0x18] sm:$0xff]
        %v287 = vld [vmem:[%s221 + $0x20] sm:$0xff]
        %v288 = vld [vmem:[%s221 + $0x28] sm:$0xff]
        %v289 = vld [vmem:[%s221 + $0x30] sm:$0xff]
        %v290 = vld [vmem:[%s221 + $0x38] sm:$0xff]
        %v291 = vsub.f32 %v275, %v283
        %v292 = vsub.f32 %v276, %v284
        %v293 = vsub.f32 %v277, %v285
        %v294 = vsub.f32 %v278, %v286
        %v295 = vsub.f32 %v279, %v287
        %v296 = vsub.f32 %v280, %v288
        %v297 = vsub.f32 %v281, %v289
        %v298 = vsub.f32 %v282, %v290
        %v299 = vld [vmem:[#allocation2] sm:$0x1]
        %v300 = vmul.f32 %v291, %v291
        %v301 = vmul.f32 %v292, %v292
        %v302 = vmul.f32 %v293, %v293
        %v303 = vmul.f32 %v294, %v294
        %v304 = vmul.f32 %v295, %v295
        %v305 = vmul.f32 %v296, %v296
        %v306 = vmul.f32 %v297, %v297
        %v307 = vmul.f32 %v298, %v298
        %vm308 = vcmask 130048
        %v309 = vsel %vm308, %v300, 0.0
        %v310 = vsel %vm308, %v301, 0.0
        %v311 = vadd.f32 %v309, %v310
        %v312 = vsel %vm308, %v302, 0.0
        %v313 = vadd.f32 %v311, %v312
        %v314 = vsel %vm308, %v303, 0.0
        %v315 = vadd.f32 %v313, %v314
        %v316 = vsel %vm308, %v304, 0.0
        %v317 = vadd.f32 %v315, %v316
        %v318 = vsel %vm308, %v305, 0.0
        %v319 = vadd.f32 %v317, %v318
        %v320 = vsel %vm308, %v306, 0.0
        %v321 = vadd.f32 %v319, %v320
        %v322 = vsel %vm308, %v307, 0.0
        %v323 = vadd.f32 %v321, %v322
        %324 = vadd.xlane.f32.xlu0 %v323
        %v325 = vpop.xlane.xlu0 %324
        %v326 = vrot.slane %v325, 4
        %v327 = vadd.f32 %v325, %v326
        %v328 = vrot.slane %v327, 2
        %v329 = vadd.f32 %v327, %v328
        %v330 = vrot.slane %v329, 1
        %v331 = vadd.f32 %v329, %v330
        %s332 = vtos %v331
        %v333 = vstv %s332
        %v334 = vadd.f32 %v299, %v333
        %335 = vst [vmem:[#allocation2] sm:$0x1] %v334
        %v336 = vld [vmem:[#allocation4] sm:$0x3]
        %v337 = vld [vmem:[#allocation4 + $0x2] sm:$0x3]
        %v338 = vld [vmem:[#allocation4 + $0x4] sm:$0x3]
        %v339 = vld [vmem:[#allocation5] sm:$0x3]
        %v340 = vld [vmem:[#allocation5 + $0x2] sm:$0x3]
        %v341 = vld [vmem:[#allocation5 + $0x4] sm:$0x3]
        %v342 = vlaneseq
        %v343 = vand.u32 %v342, 127
        %v344 = vlaneseq
        %v345 = vshrl.u32 %v344, 7
        %v346 = vadd.s32 %v345, 8
        %vm347 = vcmp.lt.s32.totalorder %v343, 15
        %vm348 = vcmp.gt.s32.totalorder %v343, 0
        %vm349 = vcmp.eq.s32.totalorder %v345, 0
        %vm350 = vcmp.eq.s32.totalorder %v346, 0
        %v351 = vrot.slane %v275, 7
        %v352 = vrot.slane %v277, 7
        %v353 = vrot.slane %v279, 7
        %v354 = vrot.slane %v276, 7
        %v355 = vrot.slane %v278, 7
        %v356 = vrot.slane %v280, 7
        %vm357 = vcmp.lt.s32.totalorder %v345, 1
        %v358 = vsel %vm357, %v351, %v354
        %v359 = vsel %vm357, %v352, %v355
        %v360 = vsel %vm357, %v353, %v356
        %v361 = vsel %vm357, %v354, %v351
        %v362 = vsel %vm357, %v355, %v352
        %v363 = vsel %vm357, %v356, %v353
        %v364 = vsel %vm349, 1, 0
        %v365 = vsel %vm350, 1, 0
        %vm366 = vcmp.eq.s32.totalorder %v364, 1
        %vm367 = vcmp.eq.s32.totalorder %v365, 1
        %v368 = vlaneseq
        %v369 = vshrl.u32 %v368, 7
        %v370 = vsub.s32 1, %v369
        %v371 = vrot.slane %v336, %v370
        %v372 = vlaneseq
        %v373 = vshrl.u32 %v372, 7
        %v374 = vsub.s32 1, %v373
        %v375 = vrot.slane %v337, %v374
        %v376 = vlaneseq
        %v377 = vshrl.u32 %v376, 7
        %v378 = vsub.s32 1, %v377
        %v379 = vrot.slane %v338, %v378
        %v380 = vsel %vm366, %v371, %v361
        %v381 = vsel %vm367, %v371, %v358
        %v382 = vsel %vm366, %v375, %v362
        %v383 = vsel %vm367, %v375, %v359
        %v384 = vsel %vm366, %v379, %v363
        %v385 = vsel %vm367, %v379, %v360
        %v386 = vrot.slane %v380, 7
        %v387 = vrot.slane %v382, 7
        %v388 = vrot.slane %v384, 7
        %v389 = vrot.slane %v381, 7
        %v390 = vrot.slane %v383, 7
        %v391 = vrot.slane %v385, 7
        %v392 = vsel %vm357, %v386, %v389
        %v393 = vsel %vm357, %v387, %v390
        %v394 = vsel %vm357, %v388, %v391
        %v395 = vsel %vm357, %v389, %v386
        %v396 = vsel %vm357, %v390, %v387
        %v397 = vsel %vm357, %v391, %v388
        %v398 = vlaneseq
        %v399 = vshrl.u32 %v398, 7
        %v400 = vsub.s32 0, %v399
        %v401 = vrot.slane %v336, %v400
        %v402 = vlaneseq
        %v403 = vshrl.u32 %v402, 7
        %v404 = vsub.s32 0, %v403
        %v405 = vrot.slane %v337, %v404
        %v406 = vlaneseq
        %v407 = vshrl.u32 %v406, 7
        %v408 = vsub.s32 0, %v407
        %v409 = vrot.slane %v338, %v408
        %v410 = vsel %vm366, %v401, %v395
        %v411 = vsel %vm367, %v401, %v392
        %v412 = vsel %vm366, %v405, %v396
        %v413 = vsel %vm367, %v405, %v393
        %v414 = vsel %vm366, %v409, %v397
        %v415 = vsel %vm367, %v409, %v394
        %v416 = vrot.slane %v283, 7
        %v417 = vrot.slane %v285, 7
        %v418 = vrot.slane %v287, 7
        %v419 = vrot.slane %v284, 7
        %v420 = vrot.slane %v286, 7
        %v421 = vrot.slane %v288, 7
        %v422 = vsel %vm357, %v416, %v419
        %v423 = vsel %vm357, %v417, %v420
        %v424 = vsel %vm357, %v418, %v421
        %v425 = vsel %vm357, %v419, %v416
        %v426 = vsel %vm357, %v420, %v417
        %v427 = vsel %vm357, %v421, %v418
        %v428 = vlaneseq
        %v429 = vshrl.u32 %v428, 7
        %v430 = vsub.s32 1, %v429
        %v431 = vrot.slane %v339, %v430
        %v432 = vlaneseq
        %v433 = vshrl.u32 %v432, 7
        %v434 = vsub.s32 1, %v433
        %v435 = vrot.slane %v340, %v434
        %v436 = vlaneseq
        %v437 = vshrl.u32 %v436, 7
        %v438 = vsub.s32 1, %v437
        %v439 = vrot.slane %v341, %v438
        %v440 = vsel %vm366, %v431, %v425
        %v441 = vsel %vm367, %v431, %v422
        %v442 = vsel %vm366, %v435, %v426
        %v443 = vsel %vm367, %v435, %v423
        %v444 = vsel %vm366, %v439, %v427
        %v445 = vsel %vm367, %v439, %v424
        %v446 = vrot.slane %v440, 7
        %v447 = vrot.slane %v442, 7
        %v448 = vrot.slane %v444, 7
        %v449 = vrot.slane %v441, 7
        %v450 = vrot.slane %v443, 7
        %v451 = vrot.slane %v445, 7
        %v452 = vsel %vm357, %v446, %v449
        %v453 = vsel %vm357, %v447, %v450
        %v454 = vsel %vm357, %v448, %v451
        %v455 = vsel %vm357, %v449, %v446
        %v456 = vsel %vm357, %v450, %v447
        %v457 = vsel %vm357, %v451, %v448
        %v458 = vlaneseq
        %v459 = vshrl.u32 %v458, 7
        %v460 = vsub.s32 0, %v459
        %v461 = vrot.slane %v339, %v460
        %v462 = vlaneseq
        %v463 = vshrl.u32 %v462, 7
        %v464 = vsub.s32 0, %v463
        %v465 = vrot.slane %v340, %v464
        %v466 = vlaneseq
        %v467 = vshrl.u32 %v466, 7
        %v468 = vsub.s32 0, %v467
        %v469 = vrot.slane %v341, %v468
        %v470 = vsel %vm366, %v461, %v455
        %v471 = vsel %vm367, %v461, %v452
        %v472 = vsel %vm366, %v465, %v456
        %v473 = vsel %vm367, %v465, %v453
        %v474 = vsel %vm366, %v469, %v457
        %v475 = vsel %vm367, %v469, %v454
        %vm476 = vcmask 1047680
        %477 = vrot.lane.b32.xlu0 %v380, 16
        %v478 = vpop.permute.xlu0 %477
        %v479 = vsel %vm476, %v478, %v380
        %480 = vrot.lane.b32.xlu0 %v381, 16
        %v481 = vpop.permute.xlu0 %480
        %v482 = vsel %vm476, %v481, %v381
        %483 = vrot.lane.b32.xlu0 %v382, 16
        %v484 = vpop.permute.xlu0 %483
        %v485 = vsel %vm476, %v484, %v382
        %486 = vrot.lane.b32.xlu0 %v383, 16
        %v487 = vpop.permute.xlu0 %486
        %v488 = vsel %vm476, %v487, %v383
        %489 = vrot.lane.b32.xlu0 %v384, 16
        %v490 = vpop.permute.xlu0 %489
        %v491 = vsel %vm476, %v490, %v384
        %492 = vrot.lane.b32.xlu0 %v385, 16
        %v493 = vpop.permute.xlu0 %492
        %v494 = vsel %vm476, %v493, %v385
        %495 = vrot.lane.b32.xlu0 %v479, 16
        %v496 = vpop.permute.xlu0 %495
        %497 = vrot.lane.b32.xlu0 %v482, 16
        %v498 = vpop.permute.xlu0 %497
        %499 = vrot.lane.b32.xlu0 %v485, 16
        %v500 = vpop.permute.xlu0 %499
        %501 = vrot.lane.b32.xlu0 %v488, 16
        %v502 = vpop.permute.xlu0 %501
        %503 = vrot.lane.b32.xlu0 %v491, 16
        %v504 = vpop.permute.xlu0 %503
        %505 = vrot.lane.b32.xlu0 %v494, 16
        %v506 = vpop.permute.xlu0 %505
        %v507 = vsel %vm476, %v496, %v380
        %v508 = vsel %vm476, %v498, %v381
        %v509 = vsel %vm476, %v500, %v382
        %v510 = vsel %vm476, %v502, %v383
        %v511 = vsel %vm476, %v504, %v384
        %v512 = vsel %vm476, %v506, %v385
        %v513 = vsel %vm347, 1, 0
        %vm514 = vcmp.eq.s32.totalorder %v513, 1
        %521 = vrot.lane.b32.xlu0 %v507, 127
        %v522 = vpop.permute.xlu0 %521
        %523 = vrot.lane.b32.xlu0 %v508, 127
        %v524 = vpop.permute.xlu0 %523
        %525 = vrot.lane.b32.xlu0 %v509, 127
        %v526 = vpop.permute.xlu0 %525
        %527 = vrot.lane.b32.xlu0 %v510, 127
        %v528 = vpop.permute.xlu0 %527
        %529 = vrot.lane.b32.xlu0 %v511, 127
        %v530 = vpop.permute.xlu0 %529
        %531 = vrot.lane.b32.xlu0 %v512, 127
        %v532 = vpop.permute.xlu0 %531
        %v539 = vsel %vm514, %v522, 0.0
        %v540 = vsel %vm514, %v524, 0.0
        %v541 = vsel %vm514, %v526, 0.0
        %v542 = vsel %vm514, %v528, 0.0
        %v543 = vsel %vm514, %v530, 0.0
        %v544 = vsel %vm514, %v532, 0.0
        %v545 = vsel %vm348, 1, 0
        %vm546 = vcmp.eq.s32.totalorder %v545, 1
        %547 = vrot.lane.b32.xlu0 %v507, 113
        %v548 = vpop.permute.xlu0 %547
        %549 = vrot.lane.b32.xlu0 %v508, 113
        %v550 = vpop.permute.xlu0 %549
        %551 = vrot.lane.b32.xlu0 %v509, 113
        %v552 = vpop.permute.xlu0 %551
        %553 = vrot.lane.b32.xlu0 %v510, 113
        %v554 = vpop.permute.xlu0 %553
        %555 = vrot.lane.b32.xlu0 %v511, 113
        %v556 = vpop.permute.xlu0 %555
        %557 = vrot.lane.b32.xlu0 %v512, 113
        %v558 = vpop.permute.xlu0 %557
        %v565 = vsel %vm546, %v548, 0.0
        %v566 = vsel %vm546, %v550, 0.0
        %v567 = vsel %vm546, %v552, 0.0
        %v568 = vsel %vm546, %v554, 0.0
        %v569 = vsel %vm546, %v556, 0.0
        %v570 = vsel %vm546, %v558, 0.0
        %v571 = vsub.f32 %v539, %v565
        %v572 = vsub.f32 %v540, %v566
        %v573 = vsub.f32 %v541, %v567
        %v574 = vsub.f32 %v542, %v568
        %v575 = vsub.f32 %v543, %v569
        %v576 = vsub.f32 %v544, %v570
        %v577 = vmul.f32 %v571, 0.5
        %v578 = vmul.f32 %v572, 0.5
        %v579 = vmul.f32 %v573, 0.5
        %v580 = vmul.f32 %v574, 0.5
        %v581 = vmul.f32 %v575, 0.5
        %v582 = vmul.f32 %v576, 0.5
        %v583 = vmul.f32 %v577, %v577
        %v584 = vmul.f32 %v578, %v578
        %v585 = vmul.f32 %v579, %v579
        %v586 = vmul.f32 %v580, %v580
        %v587 = vmul.f32 %v581, %v581
        %v588 = vmul.f32 %v582, %v582
        %v589 = vsub.f32 %v410, %v275
        %v590 = vsub.f32 %v411, %v276
        %v591 = vsub.f32 %v412, %v277
        %v592 = vsub.f32 %v413, %v278
        %v593 = vsub.f32 %v414, %v279
        %v594 = vsub.f32 %v415, %v280
        %v595 = vmul.f32 %v589, 0.5
        %v596 = vmul.f32 %v590, 0.5
        %v597 = vmul.f32 %v591, 0.5
        %v598 = vmul.f32 %v592, 0.5
        %v599 = vmul.f32 %v593, 0.5
        %v600 = vmul.f32 %v594, 0.5
        %v601 = vmul.f32 %v595, %v595
        %v602 = vmul.f32 %v596, %v596
        %v603 = vmul.f32 %v597, %v597
        %v604 = vmul.f32 %v598, %v598
        %v605 = vmul.f32 %v599, %v599
        %v606 = vmul.f32 %v600, %v600
        %v607 = vadd.f32 %v583, %v601
        %v608 = vadd.f32 %v584, %v602
        %v609 = vadd.f32 %v585, %v603
        %v610 = vadd.f32 %v586, %v604
        %v611 = vadd.f32 %v587, %v605
        %v612 = vadd.f32 %v588, %v606
        %v613 = vadd.f32 %v607, 1e-06
        %v614 = vadd.f32 %v608, 1e-06
        %v615 = vadd.f32 %v609, 1e-06
        %v616 = vadd.f32 %v610, 1e-06
        %v617 = vadd.f32 %v611, 1e-06
        %v618 = vadd.f32 %v612, 1e-06
        %v619 = vrsqrt.pop %v613
        %v620 = vmul.f32 %v613, %v619
        %vm621 = vcmp.eq.f32.partialorder %v613, inf
        %v622 = vsel %vm621, %v613, %v620
        %vm623 = vcmp.eq.f32.partialorder %v613, 0.0
        %v624 = vand.u32 %v613, 2147483648
        %v625 = vsel %vm623, %v624, %v622
        %v626 = vrsqrt.pop %v614
        %v627 = vmul.f32 %v614, %v626
        %vm628 = vcmp.eq.f32.partialorder %v614, inf
        %v629 = vsel %vm628, %v614, %v627
        %vm630 = vcmp.eq.f32.partialorder %v614, 0.0
        %v631 = vand.u32 %v614, 2147483648
        %v632 = vsel %vm630, %v631, %v629
        %v633 = vrsqrt.pop %v615
        %v634 = vmul.f32 %v615, %v633
        %vm635 = vcmp.eq.f32.partialorder %v615, inf
        %v636 = vsel %vm635, %v615, %v634
        %vm637 = vcmp.eq.f32.partialorder %v615, 0.0
        %v638 = vand.u32 %v615, 2147483648
        %v639 = vsel %vm637, %v638, %v636
        %v640 = vrsqrt.pop %v616
        %v641 = vmul.f32 %v616, %v640
        %vm642 = vcmp.eq.f32.partialorder %v616, inf
        %v643 = vsel %vm642, %v616, %v641
        %vm644 = vcmp.eq.f32.partialorder %v616, 0.0
        %v645 = vand.u32 %v616, 2147483648
        %v646 = vsel %vm644, %v645, %v643
        %v647 = vrsqrt.pop %v617
        %v648 = vmul.f32 %v617, %v647
        %vm649 = vcmp.eq.f32.partialorder %v617, inf
        %v650 = vsel %vm649, %v617, %v648
        %vm651 = vcmp.eq.f32.partialorder %v617, 0.0
        %v652 = vand.u32 %v617, 2147483648
        %v653 = vsel %vm651, %v652, %v650
        %v654 = vrsqrt.pop %v618
        %v655 = vmul.f32 %v618, %v654
        %vm656 = vcmp.eq.f32.partialorder %v618, inf
        %v657 = vsel %vm656, %v618, %v655
        %vm658 = vcmp.eq.f32.partialorder %v618, 0.0
        %v659 = vand.u32 %v618, 2147483648
        %v660 = vsel %vm658, %v659, %v657
        %661 = vrot.lane.b32.xlu0 %v440, 16
        %v662 = vpop.permute.xlu0 %661
        %v663 = vsel %vm476, %v662, %v440
        %664 = vrot.lane.b32.xlu0 %v441, 16
        %v665 = vpop.permute.xlu0 %664
        %v666 = vsel %vm476, %v665, %v441
        %667 = vrot.lane.b32.xlu0 %v442, 16
        %v668 = vpop.permute.xlu0 %667
        %v669 = vsel %vm476, %v668, %v442
        %670 = vrot.lane.b32.xlu0 %v443, 16
        %v671 = vpop.permute.xlu0 %670
        %v672 = vsel %vm476, %v671, %v443
        %673 = vrot.lane.b32.xlu0 %v444, 16
        %v674 = vpop.permute.xlu0 %673
        %v675 = vsel %vm476, %v674, %v444
        %676 = vrot.lane.b32.xlu0 %v445, 16
        %v677 = vpop.permute.xlu0 %676
        %v678 = vsel %vm476, %v677, %v445
        %679 = vrot.lane.b32.xlu0 %v663, 16
        %v680 = vpop.permute.xlu0 %679
        %681 = vrot.lane.b32.xlu0 %v666, 16
        %v682 = vpop.permute.xlu0 %681
        %683 = vrot.lane.b32.xlu0 %v669, 16
        %v684 = vpop.permute.xlu0 %683
        %685 = vrot.lane.b32.xlu0 %v672, 16
        %v686 = vpop.permute.xlu0 %685
        %687 = vrot.lane.b32.xlu0 %v675, 16
        %v688 = vpop.permute.xlu0 %687
        %689 = vrot.lane.b32.xlu0 %v678, 16
        %v690 = vpop.permute.xlu0 %689
        %v691 = vsel %vm476, %v680, %v440
        %v692 = vsel %vm476, %v682, %v441
        %v693 = vsel %vm476, %v684, %v442
        %v694 = vsel %vm476, %v686, %v443
        %v695 = vsel %vm476, %v688, %v444
        %v696 = vsel %vm476, %v690, %v445
        %703 = vrot.lane.b32.xlu0 %v691, 127
        %v704 = vpop.permute.xlu0 %703
        %705 = vrot.lane.b32.xlu0 %v692, 127
        %v706 = vpop.permute.xlu0 %705
        %707 = vrot.lane.b32.xlu0 %v693, 127
        %v708 = vpop.permute.xlu0 %707
        %709 = vrot.lane.b32.xlu0 %v694, 127
        %v710 = vpop.permute.xlu0 %709
        %711 = vrot.lane.b32.xlu0 %v695, 127
        %v712 = vpop.permute.xlu0 %711
        %713 = vrot.lane.b32.xlu0 %v696, 127
        %v714 = vpop.permute.xlu0 %713
        %v721 = vsel %vm514, %v704, 0.0
        %v722 = vsel %vm514, %v706, 0.0
        %v723 = vsel %vm514, %v708, 0.0
        %v724 = vsel %vm514, %v710, 0.0
        %v725 = vsel %vm514, %v712, 0.0
        %v726 = vsel %vm514, %v714, 0.0
        %727 = vrot.lane.b32.xlu0 %v691, 113
        %v728 = vpop.permute.xlu0 %727
        %729 = vrot.lane.b32.xlu0 %v692, 113
        %v730 = vpop.permute.xlu0 %729
        %731 = vrot.lane.b32.xlu0 %v693, 113
        %v732 = vpop.permute.xlu0 %731
        %733 = vrot.lane.b32.xlu0 %v694, 113
        %v734 = vpop.permute.xlu0 %733
        %735 = vrot.lane.b32.xlu0 %v695, 113
        %v736 = vpop.permute.xlu0 %735
        %737 = vrot.lane.b32.xlu0 %v696, 113
        %v738 = vpop.permute.xlu0 %737
        %v745 = vsel %vm546, %v728, 0.0
        %v746 = vsel %vm546, %v730, 0.0
        %v747 = vsel %vm546, %v732, 0.0
        %v748 = vsel %vm546, %v734, 0.0
        %v749 = vsel %vm546, %v736, 0.0
        %v750 = vsel %vm546, %v738, 0.0
        %v751 = vsub.f32 %v721, %v745
        %v752 = vsub.f32 %v722, %v746
        %v753 = vsub.f32 %v723, %v747
        %v754 = vsub.f32 %v724, %v748
        %v755 = vsub.f32 %v725, %v749
        %v756 = vsub.f32 %v726, %v750
        %v757 = vmul.f32 %v751, 0.5
        %v758 = vmul.f32 %v752, 0.5
        %v759 = vmul.f32 %v753, 0.5
        %v760 = vmul.f32 %v754, 0.5
        %v761 = vmul.f32 %v755, 0.5
        %v762 = vmul.f32 %v756, 0.5
        %v763 = vmul.f32 %v757, %v757
        %v764 = vmul.f32 %v758, %v758
        %v765 = vmul.f32 %v759, %v759
        %v766 = vmul.f32 %v760, %v760
        %v767 = vmul.f32 %v761, %v761
        %v768 = vmul.f32 %v762, %v762
        %v769 = vsub.f32 %v470, %v283
        %v770 = vsub.f32 %v471, %v284
        %v771 = vsub.f32 %v472, %v285
        %v772 = vsub.f32 %v473, %v286
        %v773 = vsub.f32 %v474, %v287
        %v774 = vsub.f32 %v475, %v288
        %v775 = vmul.f32 %v769, 0.5
        %v776 = vmul.f32 %v770, 0.5
        %v777 = vmul.f32 %v771, 0.5
        %v778 = vmul.f32 %v772, 0.5
        %v779 = vmul.f32 %v773, 0.5
        %v780 = vmul.f32 %v774, 0.5
        %v781 = vmul.f32 %v775, %v775
        %v782 = vmul.f32 %v776, %v776
        %v783 = vmul.f32 %v777, %v777
        %v784 = vmul.f32 %v778, %v778
        %v785 = vmul.f32 %v779, %v779
        %v786 = vmul.f32 %v780, %v780
        %v787 = vadd.f32 %v763, %v781
        %v788 = vadd.f32 %v764, %v782
        %v789 = vadd.f32 %v765, %v783
        %v790 = vadd.f32 %v766, %v784
        %v791 = vadd.f32 %v767, %v785
        %v792 = vadd.f32 %v768, %v786
        %v793 = vadd.f32 %v787, 1e-06
        %v794 = vadd.f32 %v788, 1e-06
        %v795 = vadd.f32 %v789, 1e-06
        %v796 = vadd.f32 %v790, 1e-06
        %v797 = vadd.f32 %v791, 1e-06
        %v798 = vadd.f32 %v792, 1e-06
        %v799 = vrsqrt.pop %v793
        %v800 = vmul.f32 %v793, %v799
        %vm801 = vcmp.eq.f32.partialorder %v793, inf
        %v802 = vsel %vm801, %v793, %v800
        %vm803 = vcmp.eq.f32.partialorder %v793, 0.0
        %v804 = vand.u32 %v793, 2147483648
        %v805 = vsel %vm803, %v804, %v802
        %v806 = vrsqrt.pop %v794
        %v807 = vmul.f32 %v794, %v806
        %vm808 = vcmp.eq.f32.partialorder %v794, inf
        %v809 = vsel %vm808, %v794, %v807
        %vm810 = vcmp.eq.f32.partialorder %v794, 0.0
        %v811 = vand.u32 %v794, 2147483648
        %v812 = vsel %vm810, %v811, %v809
        %v813 = vrsqrt.pop %v795
        %v814 = vmul.f32 %v795, %v813
        %vm815 = vcmp.eq.f32.partialorder %v795, inf
        %v816 = vsel %vm815, %v795, %v814
        %vm817 = vcmp.eq.f32.partialorder %v795, 0.0
        %v818 = vand.u32 %v795, 2147483648
        %v819 = vsel %vm817, %v818, %v816
        %v820 = vrsqrt.pop %v796
        %v821 = vmul.f32 %v796, %v820
        %vm822 = vcmp.eq.f32.partialorder %v796, inf
        %v823 = vsel %vm822, %v796, %v821
        %vm824 = vcmp.eq.f32.partialorder %v796, 0.0
        %v825 = vand.u32 %v796, 2147483648
        %v826 = vsel %vm824, %v825, %v823
        %v827 = vrsqrt.pop %v797
        %v828 = vmul.f32 %v797, %v827
        %vm829 = vcmp.eq.f32.partialorder %v797, inf
        %v830 = vsel %vm829, %v797, %v828
        %vm831 = vcmp.eq.f32.partialorder %v797, 0.0
        %v832 = vand.u32 %v797, 2147483648
        %v833 = vsel %vm831, %v832, %v830
        %v834 = vrsqrt.pop %v798
        %v835 = vmul.f32 %v798, %v834
        %vm836 = vcmp.eq.f32.partialorder %v798, inf
        %v837 = vsel %vm836, %v798, %v835
        %vm838 = vcmp.eq.f32.partialorder %v798, 0.0
        %v839 = vand.u32 %v798, 2147483648
        %v840 = vsel %vm838, %v839, %v837
        %v841 = vsub.f32 %v625, %v805
        %v842 = vsub.f32 %v632, %v812
        %v843 = vsub.f32 %v639, %v819
        %v844 = vsub.f32 %v646, %v826
        %v845 = vsub.f32 %v653, %v833
        %v846 = vsub.f32 %v660, %v840
        %v847 = vand.u32 2147483647, %v841
        %v848 = vand.u32 2147483647, %v842
        %v849 = vand.u32 2147483647, %v843
        %v850 = vand.u32 2147483647, %v844
        %v851 = vand.u32 2147483647, %v845
        %v852 = vand.u32 2147483647, %v846
        %s853 = scalar_select %p262, 1, 0
        %v854 = vstv %s853
        %vm855 = vcmp.eq.s32.totalorder %v854, 1
        %vm856 = vmand %vm855, %vm349
        %vm857 = vmand %vm855, %vm350
        %v858 = vsel %vm856, 1, 0
        %v859 = vsel %vm857, 1, 0
        %vm860 = vcmp.eq.s32.totalorder %v858, 1
        %vm861 = vcmp.eq.s32.totalorder %v859, 1
        %v862 = vsel %vm860, 0.0, %v847
        %v863 = vsel %vm861, 0.0, %v848
        %v864 = vsel %vm860, 0.0, %v849
        %v865 = vsel %vm861, 0.0, %v850
        %v866 = vsel %vm860, 0.0, %v851
        %v867 = vsel %vm861, 0.0, %v852
        %v868 = vld [vmem:[#allocation3] sm:$0x1]
        %v869 = vsel %vm308, %v862, 0.0
        %v870 = vsel %vm308, %v863, 0.0
        %v871 = vadd.f32 %v869, %v870
        %v872 = vsel %vm308, %v864, 0.0
        %v873 = vadd.f32 %v871, %v872
        %v874 = vsel %vm308, %v865, 0.0
        %v875 = vadd.f32 %v873, %v874
        %v876 = vsel %vm308, %v866, 0.0
        %v877 = vadd.f32 %v875, %v876
        %v878 = vsel %vm308, %v867, 0.0
        %v879 = vadd.f32 %v877, %v878
        %880 = vadd.xlane.f32.xlu0 %v879
        %v881 = vpop.xlane.xlu0 %880
        %v882 = vrot.slane %v881, 4
        %v883 = vadd.f32 %v881, %v882
        %v884 = vrot.slane %v883, 2
        %v885 = vadd.f32 %v883, %v884
        %v886 = vrot.slane %v885, 1
        %v887 = vadd.f32 %v885, %v886
        %s888 = vtos %v887
        %v889 = vstv %s888
        %v890 = vadd.f32 %v868, %v889
        %891 = vst [vmem:[#allocation3] sm:$0x1] %v890
        %vm892 = vcmask 130054
        %893 = vst.msk [vmem:[#allocation4 - $0x6] sm:$0xc0] %vm892, %v276
        %894 = vst.msk [vmem:[#allocation4 - $0x4] sm:$0xc0] %vm892, %v278
        %895 = vst.msk [vmem:[#allocation4 - $0x2] sm:$0xc0] %vm892, %v280
        %896 = vst.msk [vmem:[#allocation5 - $0x6] sm:$0xc0] %vm892, %v284
        %897 = vst.msk [vmem:[#allocation5 - $0x4] sm:$0xc0] %vm892, %v286
        %898 = vst.msk [vmem:[#allocation5 - $0x2] sm:$0xc0] %vm892, %v288
        // Predicated region
        $region41: #{image_loss.1} parent=27 // pred_check
          %p899 = pneg %p262
        $region42: #{image_loss.1} parent=27 // pred_check_branch
          %901 = sbr.rel (%p899) target = $region44
        $region43: #{image_loss.1} parent=27 // pred_region
          %v905 = vrot.slane %v276, 7
          %v906 = vrot.slane %v278, 7
          %v907 = vrot.slane %v280, 7
          %911 = vrot.lane.b32.xlu0 %v905, 16
          %v912 = vpop.permute.xlu0 %911
          %v913 = vsel %vm476, %v912, %v905
          %914 = vrot.lane.b32.xlu0 %v906, 16
          %v915 = vpop.permute.xlu0 %914
          %v916 = vsel %vm476, %v915, %v906
          %917 = vrot.lane.b32.xlu0 %v907, 16
          %v918 = vpop.permute.xlu0 %917
          %v919 = vsel %vm476, %v918, %v907
          %920 = vrot.lane.b32.xlu0 %v913, 16
          %v921 = vpop.permute.xlu0 %920
          %922 = vrot.lane.b32.xlu0 %v916, 16
          %v923 = vpop.permute.xlu0 %922
          %924 = vrot.lane.b32.xlu0 %v919, 16
          %v925 = vpop.permute.xlu0 %924
          %v926 = vsel %vm476, %v921, %v905
          %v927 = vsel %vm476, %v923, %v906
          %v928 = vsel %vm476, %v925, %v907
          %932 = vrot.lane.b32.xlu0 %v926, 127
          %v933 = vpop.permute.xlu0 %932
          %934 = vrot.lane.b32.xlu0 %v927, 127
          %v935 = vpop.permute.xlu0 %934
          %936 = vrot.lane.b32.xlu0 %v928, 127
          %v937 = vpop.permute.xlu0 %936
          %v941 = vsel %vm514, %v933, 0.0
          %v942 = vsel %vm514, %v935, 0.0
          %v943 = vsel %vm514, %v937, 0.0
          %944 = vrot.lane.b32.xlu0 %v926, 113
          %v945 = vpop.permute.xlu0 %944
          %946 = vrot.lane.b32.xlu0 %v927, 113
          %v947 = vpop.permute.xlu0 %946
          %948 = vrot.lane.b32.xlu0 %v928, 113
          %v949 = vpop.permute.xlu0 %948
          %v953 = vsel %vm546, %v945, 0.0
          %v954 = vsel %vm546, %v947, 0.0
          %v955 = vsel %vm546, %v949, 0.0
          %v956 = vsub.f32 %v941, %v953
          %v957 = vsub.f32 %v942, %v954
          %v958 = vsub.f32 %v943, %v955
          %v959 = vmul.f32 %v956, 0.5
          %v960 = vmul.f32 %v957, 0.5
          %v961 = vmul.f32 %v958, 0.5
          %v962 = vmul.f32 %v959, %v959
          %v963 = vmul.f32 %v960, %v960
          %v964 = vmul.f32 %v961, %v961
          %v965 = vmul.f32 %v276, 0.5
          %v966 = vmul.f32 %v278, 0.5
          %v967 = vmul.f32 %v280, 0.5
          %v968 = vmul.f32 %v965, %v965
          %v969 = vmul.f32 %v966, %v966
          %v970 = vmul.f32 %v967, %v967
          %v974 = vrot.slane %v968, 6
          %v975 = vrot.slane %v969, 6
          %v976 = vrot.slane %v970, 6
          %v980 = vadd.f32 %v962, %v974
          %v981 = vadd.f32 %v963, %v975
          %v982 = vadd.f32 %v964, %v976
          %v983 = vadd.f32 %v980, 1e-06
          %v984 = vadd.f32 %v981, 1e-06
          %v985 = vadd.f32 %v982, 1e-06
          %v986 = vrsqrt.pop %v983
          %v987 = vmul.f32 %v983, %v986
          %vm988 = vcmp.eq.f32.partialorder %v983, inf
          %v989 = vsel %vm988, %v983, %v987
          %vm990 = vcmp.eq.f32.partialorder %v983, 0.0
          %v991 = vand.u32 %v983, 2147483648
          %v992 = vsel %vm990, %v991, %v989
          %v993 = vrsqrt.pop %v984
          %v994 = vmul.f32 %v984, %v993
          %vm995 = vcmp.eq.f32.partialorder %v984, inf
          %v996 = vsel %vm995, %v984, %v994
          %vm997 = vcmp.eq.f32.partialorder %v984, 0.0
          %v998 = vand.u32 %v984, 2147483648
          %v999 = vsel %vm997, %v998, %v996
          %v1000 = vrsqrt.pop %v985
          %v1001 = vmul.f32 %v985, %v1000
          %vm1002 = vcmp.eq.f32.partialorder %v985, inf
          %v1003 = vsel %vm1002, %v985, %v1001
          %vm1004 = vcmp.eq.f32.partialorder %v985, 0.0
          %v1005 = vand.u32 %v985, 2147483648
          %v1006 = vsel %vm1004, %v1005, %v1003
          %v1010 = vrot.slane %v284, 7
          %v1011 = vrot.slane %v286, 7
          %v1012 = vrot.slane %v288, 7
          %1016 = vrot.lane.b32.xlu0 %v1010, 16
          %v1017 = vpop.permute.xlu0 %1016
          %v1018 = vsel %vm476, %v1017, %v1010
          %1019 = vrot.lane.b32.xlu0 %v1011, 16
          %v1020 = vpop.permute.xlu0 %1019
          %v1021 = vsel %vm476, %v1020, %v1011
          %1022 = vrot.lane.b32.xlu0 %v1012, 16
          %v1023 = vpop.permute.xlu0 %1022
          %v1024 = vsel %vm476, %v1023, %v1012
          %1025 = vrot.lane.b32.xlu0 %v1018, 16
          %v1026 = vpop.permute.xlu0 %1025
          %1027 = vrot.lane.b32.xlu0 %v1021, 16
          %v1028 = vpop.permute.xlu0 %1027
          %1029 = vrot.lane.b32.xlu0 %v1024, 16
          %v1030 = vpop.permute.xlu0 %1029
          %v1031 = vsel %vm476, %v1026, %v1010
          %v1032 = vsel %vm476, %v1028, %v1011
          %v1033 = vsel %vm476, %v1030, %v1012
          %1037 = vrot.lane.b32.xlu0 %v1031, 127
          %v1038 = vpop.permute.xlu0 %1037
          %1039 = vrot.lane.b32.xlu0 %v1032, 127
          %v1040 = vpop.permute.xlu0 %1039
          %1041 = vrot.lane.b32.xlu0 %v1033, 127
          %v1042 = vpop.permute.xlu0 %1041
          %v1046 = vsel %vm514, %v1038, 0.0
          %v1047 = vsel %vm514, %v1040, 0.0
          %v1048 = vsel %vm514, %v1042, 0.0
          %1049 = vrot.lane.b32.xlu0 %v1031, 113
          %v1050 = vpop.permute.xlu0 %1049
          %1051 = vrot.lane.b32.xlu0 %v1032, 113
          %v1052 = vpop.permute.xlu0 %1051
          %1053 = vrot.lane.b32.xlu0 %v1033, 113
          %v1054 = vpop.permute.xlu0 %1053
          %v1058 = vsel %vm546, %v1050, 0.0
          %v1059 = vsel %vm546, %v1052, 0.0
          %v1060 = vsel %vm546, %v1054, 0.0
          %v1061 = vsub.f32 %v1046, %v1058
          %v1062 = vsub.f32 %v1047, %v1059
          %v1063 = vsub.f32 %v1048, %v1060
          %v1064 = vmul.f32 %v1061, 0.5
          %v1065 = vmul.f32 %v1062, 0.5
          %v1066 = vmul.f32 %v1063, 0.5
          %v1067 = vmul.f32 %v1064, %v1064
          %v1068 = vmul.f32 %v1065, %v1065
          %v1069 = vmul.f32 %v1066, %v1066
          %v1070 = vmul.f32 %v284, 0.5
          %v1071 = vmul.f32 %v286, 0.5
          %v1072 = vmul.f32 %v288, 0.5
          %v1073 = vmul.f32 %v1070, %v1070
          %v1074 = vmul.f32 %v1071, %v1071
          %v1075 = vmul.f32 %v1072, %v1072
          %v1079 = vrot.slane %v1073, 6
          %v1080 = vrot.slane %v1074, 6
          %v1081 = vrot.slane %v1075, 6
          %v1085 = vadd.f32 %v1067, %v1079
          %v1086 = vadd.f32 %v1068, %v1080
          %v1087 = vadd.f32 %v1069, %v1081
          %v1088 = vadd.f32 %v1085, 1e-06
          %v1089 = vadd.f32 %v1086, 1e-06
          %v1090 = vadd.f32 %v1087, 1e-06
          %v1091 = vrsqrt.pop %v1088
          %v1092 = vmul.f32 %v1088, %v1091
          %vm1093 = vcmp.eq.f32.partialorder %v1088, inf
          %v1094 = vsel %vm1093, %v1088, %v1092
          %vm1095 = vcmp.eq.f32.partialorder %v1088, 0.0
          %v1096 = vand.u32 %v1088, 2147483648
          %v1097 = vsel %vm1095, %v1096, %v1094
          %v1098 = vrsqrt.pop %v1089
          %v1099 = vmul.f32 %v1089, %v1098
          %vm1100 = vcmp.eq.f32.partialorder %v1089, inf
          %v1101 = vsel %vm1100, %v1089, %v1099
          %vm1102 = vcmp.eq.f32.partialorder %v1089, 0.0
          %v1103 = vand.u32 %v1089, 2147483648
          %v1104 = vsel %vm1102, %v1103, %v1101
          %v1105 = vrsqrt.pop %v1090
          %v1106 = vmul.f32 %v1090, %v1105
          %vm1107 = vcmp.eq.f32.partialorder %v1090, inf
          %v1108 = vsel %vm1107, %v1090, %v1106
          %vm1109 = vcmp.eq.f32.partialorder %v1090, 0.0
          %v1110 = vand.u32 %v1090, 2147483648
          %v1111 = vsel %vm1109, %v1110, %v1108
          %v1112 = vsub.f32 %v992, %v1097
          %v1113 = vsub.f32 %v999, %v1104
          %v1114 = vsub.f32 %v1006, %v1111
          %v1115 = vand.u32 2147483647, %v1112
          %v1116 = vand.u32 2147483647, %v1113
          %v1117 = vand.u32 2147483647, %v1114
          %vm1118 = vcmask 122880
          %v1119 = vsel %vm1118, %v1115, 0.0
          %v1120 = vsel %vm1118, %v1116, 0.0
          %v1121 = vadd.f32 %v1119, %v1120
          %v1122 = vsel %vm1118, %v1117, 0.0
          %v1123 = vadd.f32 %v1121, %v1122
          %1124 = vadd.xlane.f32.xlu0 %v1123
          %v1125 = vpop.xlane.xlu0 %1124
          %v1126 = vrot.slane %v1125, 4
          %v1127 = vadd.f32 %v1125, %v1126
          %v1128 = vrot.slane %v1127, 2
          %v1129 = vadd.f32 %v1127, %v1128
          %v1130 = vrot.slane %v1129, 1
          %v1131 = vadd.f32 %v1129, %v1130
          %s1132 = vtos %v1131
          %v1133 = vld [vmem:[#allocation2] sm:$0x1]
          %v1134 = vmul.f32 %v1133, 0.0009765625
          %v1136 = vlaneseq
          %v1137 = vshrl.u32 %v1136, 7
          %v1138 = vsub.s32 0, %v1137
          %v1139 = vrot.slane %v1134, %v1138
          %1141 = vst [vmem:[%s257] sm:$0xff] %v1139
          %v1142 = vld [vmem:[#allocation3] sm:$0x1]
          %v1143 = vstv %s1132
          %v1144 = vadd.f32 %v1142, %v1143
          %v1146 = vlaneseq
          %v1147 = vshrl.u32 %v1146, 7
          %v1148 = vsub.s32 0, %v1147
          %v1149 = vrot.slane %v1144, %v1148
          %1151 = vst [vmem:[%s261] sm:$0xff] %v1149
        $region44: #{image_loss.1} parent=27 // pred_fallthru
          _
        %p1152 = scmp.lt.s32.totalorder %s25, 1
        %s1153 = scalar_select %p1152, %s25, 1
        %s1154 = smul.addr %s1153, 8
        %s1155 = scalar_lea.vmem %s2, %s1154
        %p1156 = scmp.lt.s32.totalorder %s25, 1
        %s1157 = scalar_select %p1156, %s25, 1
        %s1158 = smul.addr %s1157, 8
        %s1159 = scalar_lea.vmem %s3, %s1158
        // Predicated region
        $region45: #{image_loss.1} parent=27 // pred_check
          %p1160 = pneg %p107
        $region46: #{image_loss.1} parent=27 // pred_check_branch
          %1162 = sbr.rel (%p1160) target = $region48
        $region47: #{image_loss.1} parent=27 // pred_region
          _
        $region48: #{image_loss.1} parent=27 // pred_fallthru
          _
        // Predicated region
        $region49: #{image_loss.1} parent=27 // pred_check
          %p1163 = pneg %p133
        $region50: #{image_loss.1} parent=27 // pred_check_branch
          %1165 = sbr.rel (%p1163) target = $region52
        $region51: #{image_loss.1} parent=27 // pred_region
          _
        $region52: #{image_loss.1} parent=27 // pred_fallthru
          _
      $region28: #{image_loss.1} parent=5 // pred_fallthru
        _
      %p1166 = scmp.le.s32.totalorder 2, %s16
      // Predicated region
      $region53: #{image_loss.1} parent=5 // pred_check
        %p1167 = pneg %p1166
      $region54: #{image_loss.1} parent=5 // pred_check_branch
        %1169 = sbr.rel (%p1167) target = $region56
      $region55: #{image_loss.1} parent=5 // pred_region
        %s1170 = ssub.s32 %s16, 2
        // Predicated region
        $region57: #{image_loss.1} parent=55 // pred_check
          %p1171 = pneg %p113
        $region58: #{image_loss.1} parent=55 // pred_check_branch
          %1173 = sbr.rel (%p1171) target = $region60
        $region59: #{image_loss.1} parent=55 // pred_region
          %p1174 = scmp.lt.s32.totalorder %s27, 1
          %s1175 = scalar_select %p1174, %s27, 1
          %s1176 = smul.addr %s1175, 8
          %s1177 = scalar_lea.vmem %s2, %s1176
        $region60: #{image_loss.1} parent=55 // pred_fallthru
          _
        // Predicated region
        $region61: #{image_loss.1} parent=55 // pred_check
          %p1178 = pneg %p139
        $region62: #{image_loss.1} parent=55 // pred_check_branch
          %1180 = sbr.rel (%p1178) target = $region64
        $region63: #{image_loss.1} parent=55 // pred_region
          %p1181 = scmp.lt.s32.totalorder %s27, 1
          %s1182 = scalar_select %p1181, %s27, 1
          %s1183 = smul.addr %s1182, 8
          %s1184 = scalar_lea.vmem %s3, %s1183
        $region64: #{image_loss.1} parent=55 // pred_fallthru
          _
      $region56: #{image_loss.1} parent=5 // pred_fallthru
        _
    $region6: #{image_loss.1} parent=1 // loop_footer
      %s20 = sadd.s32 1, %s16
    $region7: #{image_loss.1} parent=1 // loop_footer_branch
      %15 = sbr.rel target = $region3
    $region8: #{image_loss.1} parent=1 // loop_exit
      _
    %1185 = vsyncpa [#allocation7], 1
    %s1186 = scalar_lea.sflag [#allocation7], 1
    %1187 = vsyncpa %s1186, 1
    %1188 = vsyncpa [#allocation9], 1
    %s1189 = scalar_lea.sflag [#allocation9], 1
    %1190 = vsyncpa %s1189, 1

</llo_original>
